<compile_context>
chip_gen: v5e
topology: v5e:2x2
jax: 0.10.0
libtpu: 0.0.40
codegen_flags: <defaults>
</compile_context>

<pallas_src>
import functools

import jax
import jax.numpy as jnp
from jax import lax
from jax.experimental import pallas as pl
from jax.experimental.pallas import tpu as pltpu

KERNEL_SIZE = 4
PADDING = 1
STRIDE = 2
NEGATIVE_SLOPE = 0.2
BN_EPS = 1e-5

# Matmul tile preferences (bf16 operands, f32 accumulation). Footprint with
# double buffering: (512*512 + 512*256 + 512*256)*2B*2 + 512*256*4B ~= 2.5 MiB,
# far inside scoped VMEM on v5e / v6e / v7x.
_TM = 512
_TN = 256
_TK = 512
_TM_EW = 512                      # rows per block for the affine/act kernel
_VMEM_LIMIT = 32 * 1024 * 1024    # explicit & safe on v7x (64 MiB physical)


def _round_up(x, m):
    return (x + m - 1) // m * m


def _pad_tile(dim, align, pref):
    """Pad `dim` to `align`; pick a tile (<= pref) minimizing total padding."""
    padded0 = _round_up(dim, align)
    if padded0 <= pref:
        return padded0, padded0
    best = None
    t = pref
    while t >= 128:
        p = _round_up(padded0, t)
        if best is None or p < best[0]:
            best = (p, t)
        t //= 2
    return best


def _pick_tile(dim, pref):
    """`dim` is a multiple of 128; largest tile <= pref dividing `dim`."""
    t = min(pref, dim)
    while dim % t:
        t -= 128
    return t


# --------------------------------------------------------------------------
# Pallas matmul kernels (bf16 in, f32 scratch accumulate, bf16 out)
# --------------------------------------------------------------------------
def _mm_kernel(a_ref, b_ref, o_ref, acc_ref, *, act, slope):
    k = pl.program_id(2)

    @pl.when(k == 0)
    def _():
        acc_ref[...] = jnp.zeros_like(acc_ref)

    acc_ref[...] += jnp.dot(a_ref[...], b_ref[...],
                            preferred_element_type=jnp.float32)

    @pl.when(k == pl.num_programs(2) - 1)
    def _():
        y = acc_ref[...]
        if act == "leaky" and slope != 1.0:
            y = jnp.where(y >= 0, y, slope * y)
        elif act == "tanh":
            y = jnp.tanh(y)
        o_ref[...] = y.astype(o_ref.dtype)


def _mm_stats_kernel(a_ref, b_ref, o_ref, stats_ref, acc_ref):
    """Matmul that also emits per-block column sums Sx (row 0) and Sx^2 (row 1)
    of the f32 accumulator on the last K step (for fused BatchNorm stats)."""
    k = pl.program_id(2)

    @pl.when(k == 0)
    def _():
        acc_ref[...] = jnp.zeros_like(acc_ref)

    acc_ref[...] += jnp.dot(a_ref[...], b_ref[...],
                            preferred_element_type=jnp.float32)

    @pl.when(k == pl.num_programs(2) - 1)
    def _():
        acc = acc_ref[...]
        o_ref[...] = acc.astype(o_ref.dtype)
        s1 = jnp.sum(acc, axis=0, keepdims=True)          # (1, tn)
        s2 = jnp.sum(acc * acc, axis=0, keepdims=True)    # (1, tn)
        row = lax.broadcasted_iota(jnp.int32, (8, acc.shape[1]), 0)
        stats_ref[...] = jnp.where(row == 0, s1,
                                   jnp.where(row == 1, s2, 0.0))


def pallas_matmul(a, w_p, *, act="none", slope=0.0, with_stats=False):
    """a: (M, K) bf16 (unpadded); w_p: (Kp, Np) bf16, pre-padded at build time.

    Returns the padded bf16 output (Mp, Np). If with_stats, also returns the
    per-column f32 sums (Sx, Sx^2) over the M rows (padded rows are zero and
    contribute nothing).
    """
    M, K = a.shape
    Kp, Np = w_p.shape
    assert K <= Kp
    Mp, tm = _pad_tile(M, 16, _TM)
    tk = _pick_tile(Kp, _TK)
    tn = _pick_tile(Np, _TN)
    a_p = a if (Mp == M and Kp == K) else jnp.pad(a, ((0, Mp - M), (0, Kp - K)))

    grid = (Mp // tm, Np // tn, Kp // tk)
    n_i = Mp // tm
    common = dict(
        grid=grid,
        in_specs=[pl.BlockSpec((tm, tk), lambda i, j, k: (i, k)),
                  pl.BlockSpec((tk, tn), lambda i, j, k: (k, j))],
        scratch_shapes=[pltpu.VMEM((tm, tn), jnp.float32)],
        compiler_params=pltpu.CompilerParams(
            dimension_semantics=("parallel", "parallel", "arbitrary"),
            vmem_limit_bytes=_VMEM_LIMIT),
    )

    if with_stats:
        y_p, stats = pl.pallas_call(
            _mm_stats_kernel,
            out_shape=(jax.ShapeDtypeStruct((Mp, Np), jnp.bfloat16),
                       jax.ShapeDtypeStruct((n_i * 8, Np), jnp.float32)),
            out_specs=(pl.BlockSpec((tm, tn), lambda i, j, k: (i, j)),
                       pl.BlockSpec((8, tn), lambda i, j, k: (i, j))),
            **common,
        )(a_p, w_p)
        stats = stats.reshape(n_i, 8, Np)
        sum1 = stats[:, 0, :].sum(axis=0)
        sum2 = stats[:, 1, :].sum(axis=0)
        return y_p, sum1, sum2

    y_p = pl.pallas_call(
        functools.partial(_mm_kernel, act=act, slope=slope),
        out_shape=jax.ShapeDtypeStruct((Mp, Np), jnp.bfloat16),
        out_specs=pl.BlockSpec((tm, tn), lambda i, j, k: (i, j)),
        **common,
    )(a_p, w_p)
    return y_p


# --------------------------------------------------------------------------
# Pallas elementwise kernel: per-column affine + activation (bf16 in/out)
# --------------------------------------------------------------------------
def _affine_act_kernel(x_ref, s_ref, t_ref, o_ref, *, act, slope):
    y = x_ref[...].astype(jnp.float32) * s_ref[...] + t_ref[...]
    if act == "leaky" and slope != 1.0:
        y = jnp.where(y >= 0, y, slope * y)
    elif act == "tanh":
        y = jnp.tanh(y)
    o_ref[...] = y.astype(o_ref.dtype)


def pallas_affine_act(x, scale, shift, act="none", slope=0.0):
    """x: (M, C) bf16 (possibly already padded); scale/shift: (C,) f32."""
    M, C = x.shape
    Mp, tm = _pad_tile(M, 8, _TM_EW)
    Cp = _round_up(C, 128)
    x_p = x if (Mp == M and Cp == C) else jnp.pad(x, ((0, Mp - M), (0, Cp - C)))
    s = scale.astype(jnp.float32).reshape(1, C)
    t = shift.astype(jnp.float32).reshape(1, C)
    if Cp != C:
        s = jnp.pad(s, ((0, 0), (0, Cp - C)))
        t = jnp.pad(t, ((0, 0), (0, Cp - C)))
    out = pl.pallas_call(
        functools.partial(_affine_act_kernel, act=act, slope=slope),
        out_shape=jax.ShapeDtypeStruct((Mp, Cp), jnp.bfloat16),
        grid=(Mp // tm,),
        in_specs=[pl.BlockSpec((tm, Cp), lambda i: (i, 0)),
                  pl.BlockSpec((1, Cp), lambda i: (0, 0)),
                  pl.BlockSpec((1, Cp), lambda i: (0, 0))],
        out_specs=pl.BlockSpec((tm, Cp), lambda i: (i, 0)),
        compiler_params=pltpu.CompilerParams(
            dimension_semantics=("parallel",),
            vmem_limit_bytes=_VMEM_LIMIT),
    )(x_p, s, t)
    if Mp != M or Cp != C:
        out = out[:M, :C]
    return out


# --------------------------------------------------------------------------
# Convolution glue (NHWC, bf16 im2col); matmuls happen in Pallas
# --------------------------------------------------------------------------
def _im2col_nhwc(x, KH, KW, stride):
    N, H, W, C = x.shape
    OH = (H - KH) // stride + 1
    OW = (W - KW) // stride + 1
    cols = []
    for kh in range(KH):
        for kw in range(KW):
            cols.append(x[:, kh:kh + stride * OH:stride,
                          kw:kw + stride * OW:stride, :])
    cols = jnp.stack(cols, axis=3)            # (N, OH, OW, KH*KW, C) bf16
    return cols.reshape(N * OH * OW, KH * KW * C), N, OH, OW


def _bn_scale_shift(sum1, sum2, count, gamma, beta):
    mean = sum1 / count
    var = jnp.maximum(sum2 / count - mean * mean, 0.0)   # biased, as in BN
    scale = gamma * lax.rsqrt(var + BN_EPS)
    shift = beta - mean * scale
    return scale, shift


def _conv_block(h, cfg, p, *, conv_pad, stride):
    """Conv2d (or stride-1 ConvTranspose2d lowered to a conv) + BN + act."""
    oc = cfg["cout"]
    k = cfg["k"]
    xp = jnp.pad(h, ((0, 0), (conv_pad, conv_pad), (conv_pad, conv_pad),
                     (0, 0)))
    cols, N, OH, OW = _im2col_nhwc(xp, k, k, stride)
    M = cols.shape[0]
    if cfg["bn"]:
        y_p, s1, s2 = pallas_matmul(cols, p["w_p"], with_stats=True)
        scale, shift = _bn_scale_shift(s1, s2, float(M),
                                       p["gamma_p"], p["beta_p"])
        y_p = pallas_affine_act(y_p, scale, shift, cfg["act"], cfg["slope"])
    else:
        y_p = pallas_matmul(cols, p["w_p"], act=cfg["act"], slope=cfg["slope"])
    return y_p[:M, :oc].reshape(N, OH, OW, oc)


def _convT2_block(h, cfg, p):
    """ConvTranspose2d(k=4, s=2, p=1) via the 4-phase sub-pixel matmul."""
    oc = cfg["cout"]
    N, H, W, _ = h.shape
    xp = jnp.pad(h, ((0, 0), (1, 1), (1, 1), (0, 0)))
    cols, _, PH, PW = _im2col_nhwc(xp, 2, 2, 1)          # PH=H+1, PW=W+1
    M = cols.shape[0]
    if cfg["bn"]:
        y_p = pallas_matmul(cols, p["w_p"])
    else:
        # border phase entries are invalid but finite; discarded by the slice
        y_p = pallas_matmul(cols, p["w_p"], act=cfg["act"], slope=cfg["slope"])
    # phase interleave: one transpose + reshape + slice (weight columns were
    # built in swapped phase order so no extra reversal is needed)
    full = y_p[:M, :4 * oc].reshape(N, PH, PW, 2, 2, oc)
    y_big = full.transpose(0, 1, 3, 2, 4, 5).reshape(N, 2 * PH, 2 * PW, oc)
    y = y_big[:, 1:2 * H + 1, 1:2 * W + 1, :]
    if cfg["bn"]:
        flat = y.reshape(-1, oc)
        xf = flat.astype(jnp.float32)
        mean = xf.mean(axis=0)
        var = jnp.maximum((xf * xf).mean(axis=0) - mean * mean, 0.0)
        scale = p["gamma"] * lax.rsqrt(var + BN_EPS)
        shift = p["beta"] - mean * scale
        flat = pallas_affine_act(flat, scale, shift, cfg["act"], cfg["slope"])
        y = flat.reshape(N, 2 * H, 2 * W, oc)
    return y


def _encoder_block(h, cfg, p):
    return _conv_block(h, cfg, p, conv_pad=cfg["p"], stride=cfg["s"])


def _decoder_block(h, cfg, p):
    if cfg["s"] == 2:
        return _convT2_block(h, cfg, p)
    # stride-1 transposed conv == regular conv with flipped kernel
    return _conv_block(h, cfg, p, conv_pad=cfg["k"] - 1 - cfg["p"], stride=1)


# --------------------------------------------------------------------------
# Weight-matrix precomputation (done once at build time, stored padded bf16)
# --------------------------------------------------------------------------
def _conv_wmat(w):
    """PyTorch Conv2d weight (OC, IC, KH, KW) -> (KH*KW*IC, OC)."""
    OC, IC, KH, KW = w.shape
    return w.transpose(2, 3, 1, 0).reshape(KH * KW * IC, OC)


def _convT_s1_wmat(w_t):
    """ConvTranspose2d stride-1 weight (IC, OC, KH, KW) -> equivalent conv
    matrix (KH*KW*IC, OC); pair with conv padding = KH-1-p."""
    IC, OC, KH, KW = w_t.shape
    return jnp.flip(w_t, axis=(2, 3)).transpose(2, 3, 0, 1).reshape(
        KH * KW * IC, OC)


def _convT_s2_wmat(w_t):
    """ConvTranspose2d(k=4, s=2, p=1) weight (IC, OC, 4, 4) -> (2*2*IC, 4*OC)
    4-phase sub-pixel matrix. Phase columns are ordered (re,ce) in
    ((1,1),(1,0),(0,1),(0,0)) so the output interleave is a plain
    transpose+reshape followed by a [1:2H+1] slice."""
    IC, OC, KH, KW = w_t.shape
    wf = jnp.flip(w_t, axis=(2, 3))
    mats = []
    for re in (1, 0):
        for ce in (1, 0):
            sub = wf[:, :, re::2, ce::2]                 # (IC, OC, 2, 2)
            mats.append(sub.transpose(2, 3, 0, 1).reshape(2 * 2 * IC, OC))
    return jnp.concatenate(mats, axis=1)


# --------------------------------------------------------------------------
# Architecture configuration (mirrors the PyTorch __init__ loops exactly)
# --------------------------------------------------------------------------
def encoder_layer_cfg(img_size, in_channels, out_channels, z_size,
                      n_extra_layers):
    cfg = [dict(cin=in_channels, cout=out_channels, k=KERNEL_SIZE, s=STRIDE,
                p=PADDING, bn=False, act="leaky", slope=NEGATIVE_SLOPE)]
    conv_img_size = img_size // 2
    for _ in range(n_extra_layers):
        cfg.append(dict(cin=out_channels, cout=out_channels, k=3, s=1,
                        p=PADDING, bn=True, act="leaky",
                        slope=NEGATIVE_SLOPE))
    while conv_img_size > 4:
        cin = out_channels
        out_channels = out_channels * 2
        cfg.append(dict(cin=cin, cout=out_channels, k=KERNEL_SIZE, s=STRIDE,
                        p=PADDING, bn=True, act="leaky",
                        slope=NEGATIVE_SLOPE))
        conv_img_size //= 2
    cfg.append(dict(cin=out_channels, cout=z_size, k=KERNEL_SIZE, s=1, p=0,
                    bn=False, act="none", slope=0.0))
    return cfg


def decoder_layer_cfg(img_size, in_channels, out_channels, z_size,
                      n_extra_layers):
    out_enc = in_channels
    conv_img_size = 4
    oc = out_channels // 2
    while conv_img_size != img_size:
        conv_img_size *= 2
        oc *= 2
    # NOTE: nn.LeakyReLU(True) in the reference means negative_slope=1.0,
    # i.e. the identity function -> mapped to act="none" (numerically equal).
    cfg = [dict(cin=z_size, cout=oc, k=KERNEL_SIZE, s=1, p=0, bn=True,
                act="none", slope=1.0)]
    conv_img_size = 4
    while conv_img_size < img_size // 2:
        cin = oc
        oc = oc // 2
        cfg.append(dict(cin=cin, cout=oc, k=KERNEL_SIZE, s=STRIDE, p=PADDING,
                        bn=True, act="none", slope=1.0))
        conv_img_size *= 2
    for _ in range(n_extra_layers):
        cfg.append(dict(cin=oc, cout=oc, k=3, s=1, p=PADDING, bn=True,
                        act="none", slope=1.0))
    cfg.append(dict(cin=oc, cout=out_enc, k=KERNEL_SIZE, s=STRIDE, p=PADDING,
                    bn=False, act="tanh", slope=0.0))
    return cfg


def _init_layers(key, cfgs, transposed):
    """Init raw f32 weights; precompute padded bf16 matmul matrices once."""
    layers = []
    for c in cfgs:
        key, k1 = jax.random.split(key)
        if transposed:   # ConvTranspose2d weight: (Cin, Cout, KH, KW)
            raw = 0.1 * jax.random.normal(
                k1, (c["cin"], c["cout"], c["k"], c["k"]), jnp.float32)
            wmat = _convT_s2_wmat(raw) if c["s"] == 2 else _convT_s1_wmat(raw)
        else:            # Conv2d weight: (Cout, Cin, KH, KW)
            raw = 0.1 * jax.random.normal(
                k1, (c["cout"], c["cin"], c["k"], c["k"]), jnp.float32)
            wmat = _conv_wmat(raw)
        K, N = wmat.shape
        Kp, Np = _round_up(K, 128), _round_up(N, 128)
        w_p = jnp.pad(wmat, ((0, Kp - K), (0, Np - N))).astype(jnp.bfloat16)
        layer = {"w_p": w_p, "raw": raw}
        if c["bn"]:
            oc = c["cout"]
            if transposed and c["s"] == 2:
                # stats are computed post-interleave (border windows invalid)
                layer["gamma"] = jnp.ones((oc,), jnp.float32)
                layer["beta"] = jnp.zeros((oc,), jnp.float32)
            else:
                # stats fused in the matmul: pre-pad gamma/beta to Np
                layer["gamma_p"] = jnp.pad(jnp.ones((oc,), jnp.float32),
                                           (0, Np - N))
                layer["beta_p"] = jnp.pad(jnp.zeros((oc,), jnp.float32),
                                          (0, Np - N))
        layers.append(layer)
    return layers, key


# --------------------------------------------------------------------------
# Model builder: jitted Pallas forward + pure-JAX f32 reference for checking
# --------------------------------------------------------------------------
def make_generator(opt, key):
    enc_cfg = encoder_layer_cfg(opt["img_size"], opt["in_channels"],
                                opt["out_channels"], opt["z_size"],
                                opt["n_extra_layers"])
    dec_cfg = decoder_layer_cfg(opt["img_size"], opt["in_channels"],
                                opt["out_channels"], opt["z_size"],
                                opt["n_extra_layers"])
    enc1, key = _init_layers(key, enc_cfg, transposed=False)
    dec, key = _init_layers(key, dec_cfg, transposed=True)
    enc2, key = _init_layers(key, enc_cfg, transposed=False)
    params = dict(encoder1=enc1, decoder=dec, encoder2=enc2)

    def forward(x, params):
        h = jnp.transpose(x, (0, 2, 3, 1)).astype(jnp.bfloat16)  # NCHW->NHWC
        for cfg, p in zip(enc_cfg, params["encoder1"]):
            h = _encoder_block(h, cfg, p)
        z = h
        for cfg, p in zip(dec_cfg, params["decoder"]):
            h = _decoder_block(h, cfg, p)
        x_prime = h
        for cfg, p in zip(enc_cfg, params["encoder2"]):
            h = _encoder_block(h, cfg, p)
        z_prime = h
        to_nchw = lambda t: jnp.transpose(t, (0, 3, 1, 2)).astype(jnp.float32)
        return to_nchw(x_prime), to_nchw(z), to_nchw(z_prime)

    def reference_forward(x, params):
        """Pure-JAX f32 reference (lax.conv) used only for validation."""
        prec = lax.Precision.HIGHEST

        def bn(v):
            mean = v.mean(axis=(0, 1, 2), keepdims=True)
            var = v.var(axis=(0, 1, 2), keepdims=True)
            return (v - mean) * lax.rsqrt(var + BN_EPS)

        def activate(v, cfg):
            if cfg["act"] == "leaky":
                return jnp.where(v >= 0, v, cfg["slope"] * v)
            if cfg["act"] == "tanh":
                return jnp.tanh(v)
            return v

        def run_encoder(h, layers):
            for cfg, p in zip(enc_cfg, layers):
                w = jnp.transpose(p["raw"], (2, 3, 1, 0))        # OIHW->HWIO
                h = lax.conv_general_dilated(
                    h, w, (cfg["s"], cfg["s"]), [(cfg["p"], cfg["p"])] * 2,
                    dimension_numbers=("NHWC", "HWIO", "NHWC"), precision=prec)
                if cfg["bn"]:
                    h = bn(h)
                h = activate(h, cfg)
            return h

        def run_decoder(h, layers):
            for cfg, p in zip(dec_cfg, layers):
                k = cfg["k"]
                w = jnp.transpose(jnp.flip(p["raw"], (2, 3)), (2, 3, 0, 1))
                pad = k - 1 - cfg["p"]
                h = lax.conv_general_dilated(
                    h, w, (1, 1), [(pad, pad)] * 2,
                    lhs_dilation=(cfg["s"], cfg["s"]),
                    dimension_numbers=("NHWC", "HWIO", "NHWC"), precision=prec)
                if cfg["bn"]:
                    h = bn(h)
                h = activate(h, cfg)
            return h

        h = jnp.transpose(x, (0, 2, 3, 1))
        z = run_encoder(h, params["encoder1"])
        x_prime = run_decoder(z, params["decoder"])
        z_prime = run_encoder(x_prime, params["encoder2"])
        to_nchw = lambda t: jnp.transpose(t, (0, 3, 1, 2))
        return to_nchw(x_prime), to_nchw(z), to_nchw(z_prime)

    return params, jax.jit(forward), jax.jit(reference_forward)


# --------------------------------------------------------------------------
if __name__ == "__main__":
    opt = dict(img_size=16, z_size=32, in_channels=4, out_channels=8,
               n_extra_layers=0)

    key = jax.random.PRNGKey(0)
    key, xkey, pkey = jax.random.split(key, 3)
    x = jax.random.normal(xkey, (2, opt["in_channels"], opt["img_size"],
                                 opt["img_size"]), dtype=jnp.float32)

    params, generator_forward, reference_forward = make_generator(opt, pkey)

    x_prime, z, z_prime = generator_forward(x, params)
    jax.block_until_ready((x_prime, z, z_prime))

    assert x_prime.shape == (2, opt["in_channels"], opt["img_size"],
                             opt["img_size"])
    assert z.shape == (2, opt["z_size"], 1, 1)
    assert z_prime.shape == (2, opt["z_size"], 1, 1)
    assert jnp.all(jnp.isfinite(x_prime))
    assert jnp.all(jnp.isfinite(z)) and jnp.all(jnp.isfinite(z_prime))
    assert jnp.all(jnp.abs(x_prime) <= 1.0)          # final Tanh

    # Loose numerical check against the pure-JAX f32 reference (the Pallas
    # path is bf16, so tolerances are scaled by each tensor's magnitude).
    ref_xp, ref_z, ref_zp = reference_forward(x, params)
    jax.block_until_ready((ref_xp, ref_z, ref_zp))
    for name, got, ref in (("x_prime", x_prime, ref_xp),
                           ("z", z, ref_z),
                           ("z_prime", z_prime, ref_zp)):
        scale = max(float(jnp.max(jnp.abs(ref))), 1.0)
        err = float(jnp.max(jnp.abs(got - ref)))
        assert err <= 0.2 * scale, (
            f"{name}: max|err|={err:.4f} vs scale={scale:.3f}")

    print("KERNEL_OK")
</pallas_src>

<mosaic_0001>
module attributes {stable_mosaic.version = 11 : i64} {
  func.func @_mm_kernel(%arg0: i32, %arg1: i32, %arg2: i32, %arg3: memref<128x128xbf16, #tpu.memory_space<vmem>>, %arg4: memref<128x128xbf16, #tpu.memory_space<vmem>>, %arg5: memref<128x128xbf16, #tpu.memory_space<vmem>>, %arg6: memref<128x128xf32, #tpu.memory_space<vmem>>) attributes {dimension_semantics = [#tpu.dimension_semantics<parallel>, #tpu.dimension_semantics<parallel>, #tpu.dimension_semantics<arbitrary>], iteration_bounds = array<i64: 1, 1, 1>, scalar_prefetch = 0 : i64, scratch_operands = 1 : i64, tpu.core_type = #tpu.core_type<tc>, window_params = [{transform_indices = @transform_0, window_bounds = array<i64: 128, 128>}, {transform_indices = @transform_1, window_bounds = array<i64: 128, 128>}, {transform_indices = @transform_2, window_bounds = array<i64: 128, 128>}]} {
    %c0_i32 = arith.constant 0 : i32
    %0 = arith.cmpi eq, %arg2, %c0_i32 : i32
    %1 = arith.extui %0 : i1 to i32
    %c0_i32_0 = arith.constant 0 : i32
    %2 = arith.cmpi ne, %1, %c0_i32_0 : i32
    scf.if %2 {
      %cst_10 = arith.constant 0.000000e+00 : f32
      %12 = vector.broadcast %cst_10 : f32 to vector<128x128xf32>
      %c0_11 = arith.constant 0 : index
      %c0_12 = arith.constant 0 : index
      %13 = vector.load %arg6[%c0_11, %c0_12] : memref<128x128xf32, #tpu.memory_space<vmem>>, vector<128x128xf32>
      tpu.vector_store %arg6[%c0_11, %c0_12], %12 {strides = array<i32>} : memref<128x128xf32, #tpu.memory_space<vmem>>, vector<128x128xf32>,
    } else {
    }
    %c0 = arith.constant 0 : index
    %c0_1 = arith.constant 0 : index
    %3 = vector.load %arg6[%c0, %c0_1] : memref<128x128xf32, #tpu.memory_space<vmem>>, vector<128x128xf32>
    %c0_2 = arith.constant 0 : index
    %c0_3 = arith.constant 0 : index
    %4 = vector.load %arg3[%c0_2, %c0_3] : memref<128x128xbf16, #tpu.memory_space<vmem>>, vector<128x128xbf16>
    %c0_4 = arith.constant 0 : index
    %c0_5 = arith.constant 0 : index
    %5 = vector.load %arg4[%c0_4, %c0_5] : memref<128x128xbf16, #tpu.memory_space<vmem>>, vector<128x128xbf16>
    %cst = arith.constant dense<0.000000e+00> : vector<128x128xf32>
    %6 = tpu.matmul %4, %5, %cst {dimension_numbers = #tpu.dot_dimension_numbers<[1], [0], [0], [1], [0, 0, 1, 1], [], []>} : vector<128x128xbf16>, vector<128x128xbf16>, vector<128x128xf32> -> vector<128x128xf32>
    %7 = arith.addf %3, %6 : vector<128x128xf32>
    %c0_6 = arith.constant 0 : index
    %c0_7 = arith.constant 0 : index
    %8 = vector.load %arg6[%c0_6, %c0_7] : memref<128x128xf32, #tpu.memory_space<vmem>>, vector<128x128xf32>
    tpu.vector_store %arg6[%c0_6, %c0_7], %7 {strides = array<i32>} : memref<128x128xf32, #tpu.memory_space<vmem>>, vector<128x128xf32>,
    %c0_i32_8 = arith.constant 0 : i32
    %9 = arith.cmpi eq, %arg2, %c0_i32_8 : i32
    %10 = arith.extui %9 : i1 to i32
    %c0_i32_9 = arith.constant 0 : i32
    %11 = arith.cmpi ne, %10, %c0_i32_9 : i32
    scf.if %11 {
      %c0_10 = arith.constant 0 : index
      %c0_11 = arith.constant 0 : index
      %12 = vector.load %arg6[%c0_10, %c0_11] : memref<128x128xf32, #tpu.memory_space<vmem>>, vector<128x128xf32>
      %cst_12 = arith.constant 0.000000e+00 : f32
      %13 = vector.broadcast %cst_12 : f32 to vector<128x128xf32>
      %14 = arith.cmpf oge, %12, %13 : vector<128x128xf32>
      %cst_13 = arith.constant 2.000000e-01 : f32
      %15 = vector.broadcast %cst_13 : f32 to vector<128x128xf32>
      %16 = arith.mulf %15, %12 : vector<128x128xf32>
      %17 = arith.select %14, %12, %16 : vector<128x128xi1>, vector<128x128xf32>
      %18 = arith.truncf %17 : vector<128x128xf32> to vector<128x128xbf16>
      %c0_14 = arith.constant 0 : index
      %c0_15 = arith.constant 0 : index
      %19 = vector.load %arg5[%c0_14, %c0_15] : memref<128x128xbf16, #tpu.memory_space<vmem>>, vector<128x128xbf16>
      tpu.vector_store %arg5[%c0_14, %c0_15], %18 {strides = array<i32>} : memref<128x128xbf16, #tpu.memory_space<vmem>>, vector<128x128xbf16>,
    } else {
    }
    return
  }
  func.func @transform_0(%arg0: i32, %arg1: i32, %arg2: i32) -> (i32, i32) {
    %c0_i32 = arith.constant 0 : i32
    return %arg0, %arg2 : i32, i32
  }
  func.func @transform_1(%arg0: i32, %arg1: i32, %arg2: i32) -> (i32, i32) {
    %c0_i32 = arith.constant 0 : i32
    return %arg2, %arg1 : i32, i32
  }
  func.func @transform_2(%arg0: i32, %arg1: i32, %arg2: i32) -> (i32, i32) {
    %c0_i32 = arith.constant 0 : i32
    return %arg0, %arg1 : i32, i32
  }
}

module attributes {stable_mosaic.version = 11 : i64} {
  func.func @_mm_stats_kernel(%arg0: i32, %arg1: i32, %arg2: i32, %arg3: memref<32x128xbf16, #tpu.memory_space<vmem>>, %arg4: memref<128x128xbf16, #tpu.memory_space<vmem>>, %arg5: memref<32x128xbf16, #tpu.memory_space<vmem>>, %arg6: memref<8x128xf32, #tpu.memory_space<vmem>>, %arg7: memref<32x128xf32, #tpu.memory_space<vmem>>) attributes {dimension_semantics = [#tpu.dimension_semantics<parallel>, #tpu.dimension_semantics<parallel>, #tpu.dimension_semantics<arbitrary>], iteration_bounds = array<i64: 1, 1, 1>, scalar_prefetch = 0 : i64, scratch_operands = 1 : i64, tpu.core_type = #tpu.core_type<tc>, window_params = [{transform_indices = @transform_0, window_bounds = array<i64: 32, 128>}, {transform_indices = @transform_1, window_bounds = array<i64: 128, 128>}, {transform_indices = @transform_2, window_bounds = array<i64: 32, 128>}, {transform_indices = @transform_3, window_bounds = array<i64: 8, 128>}]} {
    %c0_i32 = arith.constant 0 : i32
    %0 = arith.cmpi eq, %arg2, %c0_i32 : i32
    %1 = arith.extui %0 : i1 to i32
    %c0_i32_0 = arith.constant 0 : i32
    %2 = arith.cmpi ne, %1, %c0_i32_0 : i32
    scf.if %2 {
      %cst_10 = arith.constant 0.000000e+00 : f32
      %12 = vector.broadcast %cst_10 : f32 to vector<32x128xf32>
      %c0_11 = arith.constant 0 : index
      %c0_12 = arith.constant 0 : index
      %13 = vector.load %arg7[%c0_11, %c0_12] : memref<32x128xf32, #tpu.memory_space<vmem>>, vector<32x128xf32>
      tpu.vector_store %arg7[%c0_11, %c0_12], %12 {strides = array<i32>} : memref<32x128xf32, #tpu.memory_space<vmem>>, vector<32x128xf32>,
    } else {
    }
    %c0 = arith.constant 0 : index
    %c0_1 = arith.constant 0 : index
    %3 = vector.load %arg7[%c0, %c0_1] : memref<32x128xf32, #tpu.memory_space<vmem>>, vector<32x128xf32>
    %c0_2 = arith.constant 0 : index
    %c0_3 = arith.constant 0 : index
    %4 = vector.load %arg3[%c0_2, %c0_3] : memref<32x128xbf16, #tpu.memory_space<vmem>>, vector<32x128xbf16>
    %c0_4 = arith.constant 0 : index
    %c0_5 = arith.constant 0 : index
    %5 = vector.load %arg4[%c0_4, %c0_5] : memref<128x128xbf16, #tpu.memory_space<vmem>>, vector<128x128xbf16>
    %cst = arith.constant dense<0.000000e+00> : vector<32x128xf32>
    %6 = tpu.matmul %4, %5, %cst {dimension_numbers = #tpu.dot_dimension_numbers<[1], [0], [0], [1], [0, 0, 1, 1], [], []>} : vector<32x128xbf16>, vector<128x128xbf16>, vector<32x128xf32> -> vector<32x128xf32>
    %7 = arith.addf %3, %6 : vector<32x128xf32>
    %c0_6 = arith.constant 0 : index
    %c0_7 = arith.constant 0 : index
    %8 = vector.load %arg7[%c0_6, %c0_7] : memref<32x128xf32, #tpu.memory_space<vmem>>, vector<32x128xf32>
    tpu.vector_store %arg7[%c0_6, %c0_7], %7 {strides = array<i32>} : memref<32x128xf32, #tpu.memory_space<vmem>>, vector<32x128xf32>,
    %c0_i32_8 = arith.constant 0 : i32
    %9 = arith.cmpi eq, %arg2, %c0_i32_8 : i32
    %10 = arith.extui %9 : i1 to i32
    %c0_i32_9 = arith.constant 0 : i32
    %11 = arith.cmpi ne, %10, %c0_i32_9 : i32
    scf.if %11 {
      %c0_10 = arith.constant 0 : index
      %c0_11 = arith.constant 0 : index
      %12 = vector.load %arg7[%c0_10, %c0_11] : memref<32x128xf32, #tpu.memory_space<vmem>>, vector<32x128xf32>
      %13 = arith.truncf %12 : vector<32x128xf32> to vector<32x128xbf16>
      %c0_12 = arith.constant 0 : index
      %c0_13 = arith.constant 0 : index
      %14 = vector.load %arg5[%c0_12, %c0_13] : memref<32x128xbf16, #tpu.memory_space<vmem>>, vector<32x128xbf16>
      tpu.vector_store %arg5[%c0_12, %c0_13], %13 {strides = array<i32>} : memref<32x128xbf16, #tpu.memory_space<vmem>>, vector<32x128xbf16>,
      %cst_14 = arith.constant dense<0.000000e+00> : vector<128xf32>
      %15 = vector.multi_reduction <add>, %12, %cst_14 [0] : vector<32x128xf32> to vector<128xf32>
      %16 = vector.shape_cast %15 : vector<128xf32> to vector<1x128xf32>
      %17 = arith.mulf %12, %12 : vector<32x128xf32>
      %cst_15 = arith.constant dense<0.000000e+00> : vector<128xf32>
      %18 = vector.multi_reduction <add>, %17, %cst_15 [0] : vector<32x128xf32> to vector<128xf32>
      %19 = vector.shape_cast %18 : vector<128xf32> to vector<1x128xf32>
      %20 = tpu.iota {dimensions = array<i32: 0>} : vector<8x128xi32>
      %c0_i32_16 = arith.constant 0 : i32
      %21 = vector.broadcast %c0_i32_16 : i32 to vector<8x128xi32>
      %22 = arith.cmpi eq, %20, %21 : vector<8x128xi32>
      %c1_i32 = arith.constant 1 : i32
      %23 = vector.broadcast %c1_i32 : i32 to vector<8x128xi32>
      %24 = arith.cmpi eq, %20, %23 : vector<8x128xi32>
      %cst_17 = arith.constant 0.000000e+00 : f32
      %25 = vector.shape_cast %19 : vector<1x128xf32> to vector<1x128xf32>
      %26 = vector.broadcast %25 : vector<1x128xf32> to vector<8x128xf32>
      %27 = vector.broadcast %cst_17 : f32 to vector<8x128xf32>
      %28 = arith.select %24, %26, %27 : vector<8x128xi1>, vector<8x128xf32>
      %29 = vector.shape_cast %16 : vector<1x128xf32> to vector<1x128xf32>
      %30 = vector.broadcast %29 : vector<1x128xf32> to vector<8x128xf32>
      %31 = arith.select %22, %30, %28 : vector<8x128xi1>, vector<8x128xf32>
      %c0_18 = arith.constant 0 : index
      %c0_19 = arith.constant 0 : index
      %32 = vector.load %arg6[%c0_18, %c0_19] : memref<8x128xf32, #tpu.memory_space<vmem>>, vector<8x128xf32>
      tpu.vector_store %arg6[%c0_18, %c0_19], %31 {strides = array<i32>} : memref<8x128xf32, #tpu.memory_space<vmem>>, vector<8x128xf32>,
    } else {
    }
    return
  }
  func.func @transform_0(%arg0: i32, %arg1: i32, %arg2: i32) -> (i32, i32) {
    %c0_i32 = arith.constant 0 : i32
    return %arg0, %arg2 : i32, i32
  }
  func.func @transform_1(%arg0: i32, %arg1: i32, %arg2: i32) -> (i32, i32) {
    %c0_i32 = arith.constant 0 : i32
    return %arg2, %arg1 : i32, i32
  }
  func.func @transform_2(%arg0: i32, %arg1: i32, %arg2: i32) -> (i32, i32) {
    %c0_i32 = arith.constant 0 : i32
    return %arg0, %arg1 : i32, i32
  }
  func.func @transform_3(%arg0: i32, %arg1: i32, %arg2: i32) -> (i32, i32) {
    %c0_i32 = arith.constant 0 : i32
    return %arg0, %arg1 : i32, i32
  }
}

module attributes {stable_mosaic.version = 11 : i64} {
  func.func @_affine_act_kernel(%arg0: i32, %arg1: memref<32x128xbf16, #tpu.memory_space<vmem>>, %arg2: memref<1x128xf32, #tpu.memory_space<vmem>>, %arg3: memref<1x128xf32, #tpu.memory_space<vmem>>, %arg4: memref<32x128xbf16, #tpu.memory_space<vmem>>) attributes {dimension_semantics = [#tpu.dimension_semantics<parallel>], iteration_bounds = array<i64: 1>, scalar_prefetch = 0 : i64, scratch_operands = 0 : i64, tpu.core_type = #tpu.core_type<tc>, window_params = [{transform_indices = @transform_0, window_bounds = array<i64: 32, 128>}, {pipeline_mode = #tpu.pipeline_mode<synchronous>, transform_indices = @transform_1, window_bounds = array<i64: 1, 128>}, {pipeline_mode = #tpu.pipeline_mode<synchronous>, transform_indices = @transform_2, window_bounds = array<i64: 1, 128>}, {transform_indices = @transform_3, window_bounds = array<i64: 32, 128>}]} {
    %c0 = arith.constant 0 : index
    %c0_0 = arith.constant 0 : index
    %0 = vector.load %arg1[%c0, %c0_0] : memref<32x128xbf16, #tpu.memory_space<vmem>>, vector<32x128xbf16>
    %1 = arith.extf %0 : vector<32x128xbf16> to vector<32x128xf32>
    %c0_1 = arith.constant 0 : index
    %c0_2 = arith.constant 0 : index
    %2 = vector.load %arg2[%c0_1, %c0_2] : memref<1x128xf32, #tpu.memory_space<vmem>>, vector<1x128xf32>
    %3 = vector.broadcast %2 : vector<1x128xf32> to vector<32x128xf32>
    %4 = arith.mulf %1, %3 : vector<32x128xf32>
    %c0_3 = arith.constant 0 : index
    %c0_4 = arith.constant 0 : index
    %5 = vector.load %arg3[%c0_3, %c0_4] : memref<1x128xf32, #tpu.memory_space<vmem>>, vector<1x128xf32>
    %6 = vector.broadcast %5 : vector<1x128xf32> to vector<32x128xf32>
    %7 = arith.addf %4, %6 : vector<32x128xf32>
    %cst = arith.constant 0.000000e+00 : f32
    %8 = vector.broadcast %cst : f32 to vector<32x128xf32>
    %9 = arith.cmpf oge, %7, %8 : vector<32x128xf32>
    %cst_5 = arith.constant 2.000000e-01 : f32
    %10 = vector.broadcast %cst_5 : f32 to vector<32x128xf32>
    %11 = arith.mulf %10, %7 : vector<32x128xf32>
    %12 = arith.select %9, %7, %11 : vector<32x128xi1>, vector<32x128xf32>
    %13 = arith.truncf %12 : vector<32x128xf32> to vector<32x128xbf16>
    %c0_6 = arith.constant 0 : index
    %c0_7 = arith.constant 0 : index
    %14 = vector.load %arg4[%c0_6, %c0_7] : memref<32x128xbf16, #tpu.memory_space<vmem>>, vector<32x128xbf16>
    tpu.vector_store %arg4[%c0_6, %c0_7], %13 {strides = array<i32>} : memref<32x128xbf16, #tpu.memory_space<vmem>>, vector<32x128xbf16>,
    return
  }
  func.func @transform_0(%arg0: i32) -> (i32, i32) {
    %c0_i32 = arith.constant 0 : i32
    %c0_i32_0 = arith.constant 0 : i32
    return %arg0, %c0_i32 : i32, i32
  }
  func.func @transform_1(%arg0: i32) -> (i32, i32) {
    %c0_i32 = arith.constant 0 : i32
    %c0_i32_0 = arith.constant 0 : i32
    %c0_i32_1 = arith.constant 0 : i32
    return %c0_i32, %c0_i32_0 : i32, i32
  }
  func.func @transform_2(%arg0: i32) -> (i32, i32) {
    %c0_i32 = arith.constant 0 : i32
    %c0_i32_0 = arith.constant 0 : i32
    %c0_i32_1 = arith.constant 0 : i32
    return %c0_i32, %c0_i32_0 : i32, i32
  }
  func.func @transform_3(%arg0: i32) -> (i32, i32) {
    %c0_i32 = arith.constant 0 : i32
    %c0_i32_0 = arith.constant 0 : i32
    return %arg0, %c0_i32 : i32, i32
  }
}

module attributes {stable_mosaic.version = 11 : i64} {
  func.func @_mm_kernel(%arg0: i32, %arg1: i32, %arg2: i32, %arg3: memref<16x256xbf16, #tpu.memory_space<vmem>>, %arg4: memref<256x128xbf16, #tpu.memory_space<vmem>>, %arg5: memref<16x128xbf16, #tpu.memory_space<vmem>>, %arg6: memref<16x128xf32, #tpu.memory_space<vmem>>) attributes {dimension_semantics = [#tpu.dimension_semantics<parallel>, #tpu.dimension_semantics<parallel>, #tpu.dimension_semantics<arbitrary>], iteration_bounds = array<i64: 1, 1, 1>, scalar_prefetch = 0 : i64, scratch_operands = 1 : i64, tpu.core_type = #tpu.core_type<tc>, window_params = [{transform_indices = @transform_0, window_bounds = array<i64: 16, 256>}, {transform_indices = @transform_1, window_bounds = array<i64: 256, 128>}, {transform_indices = @transform_2, window_bounds = array<i64: 16, 128>}]} {
    %c0_i32 = arith.constant 0 : i32
    %0 = arith.cmpi eq, %arg2, %c0_i32 : i32
    %1 = arith.extui %0 : i1 to i32
    %c0_i32_0 = arith.constant 0 : i32
    %2 = arith.cmpi ne, %1, %c0_i32_0 : i32
    scf.if %2 {
      %cst_10 = arith.constant 0.000000e+00 : f32
      %12 = vector.broadcast %cst_10 : f32 to vector<16x128xf32>
      %c0_11 = arith.constant 0 : index
      %c0_12 = arith.constant 0 : index
      %13 = vector.load %arg6[%c0_11, %c0_12] : memref<16x128xf32, #tpu.memory_space<vmem>>, vector<16x128xf32>
      tpu.vector_store %arg6[%c0_11, %c0_12], %12 {strides = array<i32>} : memref<16x128xf32, #tpu.memory_space<vmem>>, vector<16x128xf32>,
    } else {
    }
    %c0 = arith.constant 0 : index
    %c0_1 = arith.constant 0 : index
    %3 = vector.load %arg6[%c0, %c0_1] : memref<16x128xf32, #tpu.memory_space<vmem>>, vector<16x128xf32>
    %c0_2 = arith.constant 0 : index
    %c0_3 = arith.constant 0 : index
    %4 = vector.load %arg3[%c0_2, %c0_3] : memref<16x256xbf16, #tpu.memory_space<vmem>>, vector<16x256xbf16>
    %c0_4 = arith.constant 0 : index
    %c0_5 = arith.constant 0 : index
    %5 = vector.load %arg4[%c0_4, %c0_5] : memref<256x128xbf16, #tpu.memory_space<vmem>>, vector<256x128xbf16>
    %cst = arith.constant dense<0.000000e+00> : vector<16x128xf32>
    %6 = tpu.matmul %4, %5, %cst {dimension_numbers = #tpu.dot_dimension_numbers<[1], [0], [0], [1], [0, 0, 1, 1], [], []>} : vector<16x256xbf16>, vector<256x128xbf16>, vector<16x128xf32> -> vector<16x128xf32>
    %7 = arith.addf %3, %6 : vector<16x128xf32>
    %c0_6 = arith.constant 0 : index
    %c0_7 = arith.constant 0 : index
    %8 = vector.load %arg6[%c0_6, %c0_7] : memref<16x128xf32, #tpu.memory_space<vmem>>, vector<16x128xf32>
    tpu.vector_store %arg6[%c0_6, %c0_7], %7 {strides = array<i32>} : memref<16x128xf32, #tpu.memory_space<vmem>>, vector<16x128xf32>,
    %c0_i32_8 = arith.constant 0 : i32
    %9 = arith.cmpi eq, %arg2, %c0_i32_8 : i32
    %10 = arith.extui %9 : i1 to i32
    %c0_i32_9 = arith.constant 0 : i32
    %11 = arith.cmpi ne, %10, %c0_i32_9 : i32
    scf.if %11 {
      %c0_10 = arith.constant 0 : index
      %c0_11 = arith.constant 0 : index
      %12 = vector.load %arg6[%c0_10, %c0_11] : memref<16x128xf32, #tpu.memory_space<vmem>>, vector<16x128xf32>
      %13 = arith.truncf %12 : vector<16x128xf32> to vector<16x128xbf16>
      %c0_12 = arith.constant 0 : index
      %c0_13 = arith.constant 0 : index
      %14 = vector.load %arg5[%c0_12, %c0_13] : memref<16x128xbf16, #tpu.memory_space<vmem>>, vector<16x128xbf16>
      tpu.vector_store %arg5[%c0_12, %c0_13], %13 {strides = array<i32>} : memref<16x128xbf16, #tpu.memory_space<vmem>>, vector<16x128xbf16>,
    } else {
    }
    return
  }
  func.func @transform_0(%arg0: i32, %arg1: i32, %arg2: i32) -> (i32, i32) {
    %c0_i32 = arith.constant 0 : i32
    return %arg0, %arg2 : i32, i32
  }
  func.func @transform_1(%arg0: i32, %arg1: i32, %arg2: i32) -> (i32, i32) {
    %c0_i32 = arith.constant 0 : i32
    return %arg2, %arg1 : i32, i32
  }
  func.func @transform_2(%arg0: i32, %arg1: i32, %arg2: i32) -> (i32, i32) {
    %c0_i32 = arith.constant 0 : i32
    return %arg0, %arg1 : i32, i32
  }
}

module attributes {stable_mosaic.version = 11 : i64} {
  func.func @_mm_stats_kernel(%arg0: i32, %arg1: i32, %arg2: i32, %arg3: memref<32x512xbf16, #tpu.memory_space<vmem>>, %arg4: memref<512x128xbf16, #tpu.memory_space<vmem>>, %arg5: memref<32x128xbf16, #tpu.memory_space<vmem>>, %arg6: memref<8x128xf32, #tpu.memory_space<vmem>>, %arg7: memref<32x128xf32, #tpu.memory_space<vmem>>) attributes {dimension_semantics = [#tpu.dimension_semantics<parallel>, #tpu.dimension_semantics<parallel>, #tpu.dimension_semantics<arbitrary>], iteration_bounds = array<i64: 1, 1, 1>, scalar_prefetch = 0 : i64, scratch_operands = 1 : i64, tpu.core_type = #tpu.core_type<tc>, window_params = [{transform_indices = @transform_0, window_bounds = array<i64: 32, 512>}, {transform_indices = @transform_1, window_bounds = array<i64: 512, 128>}, {transform_indices = @transform_2, window_bounds = array<i64: 32, 128>}, {transform_indices = @transform_3, window_bounds = array<i64: 8, 128>}]} {
    %c0_i32 = arith.constant 0 : i32
    %0 = arith.cmpi eq, %arg2, %c0_i32 : i32
    %1 = arith.extui %0 : i1 to i32
    %c0_i32_0 = arith.constant 0 : i32
    %2 = arith.cmpi ne, %1, %c0_i32_0 : i32
    scf.if %2 {
      %cst_10 = arith.constant 0.000000e+00 : f32
      %12 = vector.broadcast %cst_10 : f32 to vector<32x128xf32>
      %c0_11 = arith.constant 0 : index
      %c0_12 = arith.constant 0 : index
      %13 = vector.load %arg7[%c0_11, %c0_12] : memref<32x128xf32, #tpu.memory_space<vmem>>, vector<32x128xf32>
      tpu.vector_store %arg7[%c0_11, %c0_12], %12 {strides = array<i32>} : memref<32x128xf32, #tpu.memory_space<vmem>>, vector<32x128xf32>,
    } else {
    }
    %c0 = arith.constant 0 : index
    %c0_1 = arith.constant 0 : index
    %3 = vector.load %arg7[%c0, %c0_1] : memref<32x128xf32, #tpu.memory_space<vmem>>, vector<32x128xf32>
    %c0_2 = arith.constant 0 : index
    %c0_3 = arith.constant 0 : index
    %4 = vector.load %arg3[%c0_2, %c0_3] : memref<32x512xbf16, #tpu.memory_space<vmem>>, vector<32x512xbf16>
    %c0_4 = arith.constant 0 : index
    %c0_5 = arith.constant 0 : index
    %5 = vector.load %arg4[%c0_4, %c0_5] : memref<512x128xbf16, #tpu.memory_space<vmem>>, vector<512x128xbf16>
    %cst = arith.constant dense<0.000000e+00> : vector<32x128xf32>
    %6 = tpu.matmul %4, %5, %cst {dimension_numbers = #tpu.dot_dimension_numbers<[1], [0], [0], [1], [0, 0, 1, 1], [], []>} : vector<32x512xbf16>, vector<512x128xbf16>, vector<32x128xf32> -> vector<32x128xf32>
    %7 = arith.addf %3, %6 : vector<32x128xf32>
    %c0_6 = arith.constant 0 : index
    %c0_7 = arith.constant 0 : index
    %8 = vector.load %arg7[%c0_6, %c0_7] : memref<32x128xf32, #tpu.memory_space<vmem>>, vector<32x128xf32>
    tpu.vector_store %arg7[%c0_6, %c0_7], %7 {strides = array<i32>} : memref<32x128xf32, #tpu.memory_space<vmem>>, vector<32x128xf32>,
    %c0_i32_8 = arith.constant 0 : i32
    %9 = arith.cmpi eq, %arg2, %c0_i32_8 : i32
    %10 = arith.extui %9 : i1 to i32
    %c0_i32_9 = arith.constant 0 : i32
    %11 = arith.cmpi ne, %10, %c0_i32_9 : i32
    scf.if %11 {
      %c0_10 = arith.constant 0 : index
      %c0_11 = arith.constant 0 : index
      %12 = vector.load %arg7[%c0_10, %c0_11] : memref<32x128xf32, #tpu.memory_space<vmem>>, vector<32x128xf32>
      %13 = arith.truncf %12 : vector<32x128xf32> to vector<32x128xbf16>
      %c0_12 = arith.constant 0 : index
      %c0_13 = arith.constant 0 : index
      %14 = vector.load %arg5[%c0_12, %c0_13] : memref<32x128xbf16, #tpu.memory_space<vmem>>, vector<32x128xbf16>
      tpu.vector_store %arg5[%c0_12, %c0_13], %13 {strides = array<i32>} : memref<32x128xbf16, #tpu.memory_space<vmem>>, vector<32x128xbf16>,
      %cst_14 = arith.constant dense<0.000000e+00> : vector<128xf32>
      %15 = vector.multi_reduction <add>, %12, %cst_14 [0] : vector<32x128xf32> to vector<128xf32>
      %16 = vector.shape_cast %15 : vector<128xf32> to vector<1x128xf32>
      %17 = arith.mulf %12, %12 : vector<32x128xf32>
      %cst_15 = arith.constant dense<0.000000e+00> : vector<128xf32>
      %18 = vector.multi_reduction <add>, %17, %cst_15 [0] : vector<32x128xf32> to vector<128xf32>
      %19 = vector.shape_cast %18 : vector<128xf32> to vector<1x128xf32>
      %20 = tpu.iota {dimensions = array<i32: 0>} : vector<8x128xi32>
      %c0_i32_16 = arith.constant 0 : i32
      %21 = vector.broadcast %c0_i32_16 : i32 to vector<8x128xi32>
      %22 = arith.cmpi eq, %20, %21 : vector<8x128xi32>
      %c1_i32 = arith.constant 1 : i32
      %23 = vector.broadcast %c1_i32 : i32 to vector<8x128xi32>
      %24 = arith.cmpi eq, %20, %23 : vector<8x128xi32>
      %cst_17 = arith.constant 0.000000e+00 : f32
      %25 = vector.shape_cast %19 : vector<1x128xf32> to vector<1x128xf32>
      %26 = vector.broadcast %25 : vector<1x128xf32> to vector<8x128xf32>
      %27 = vector.broadcast %cst_17 : f32 to vector<8x128xf32>
      %28 = arith.select %24, %26, %27 : vector<8x128xi1>, vector<8x128xf32>
      %29 = vector.shape_cast %16 : vector<1x128xf32> to vector<1x128xf32>
      %30 = vector.broadcast %29 : vector<1x128xf32> to vector<8x128xf32>
      %31 = arith.select %22, %30, %28 : vector<8x128xi1>, vector<8x128xf32>
      %c0_18 = arith.constant 0 : index
      %c0_19 = arith.constant 0 : index
      %32 = vector.load %arg6[%c0_18, %c0_19] : memref<8x128xf32, #tpu.memory_space<vmem>>, vector<8x128xf32>
      tpu.vector_store %arg6[%c0_18, %c0_19], %31 {strides = array<i32>} : memref<8x128xf32, #tpu.memory_space<vmem>>, vector<8x128xf32>,
    } else {
    }
    return
  }
  func.func @transform_0(%arg0: i32, %arg1: i32, %arg2: i32) -> (i32, i32) {
    %c0_i32 = arith.constant 0 : i32
    return %arg0, %arg2 : i32, i32
  }
  func.func @transform_1(%arg0: i32, %arg1: i32, %arg2: i32) -> (i32, i32) {
    %c0_i32 = arith.constant 0 : i32
    return %arg2, %arg1 : i32, i32
  }
  func.func @transform_2(%arg0: i32, %arg1: i32, %arg2: i32) -> (i32, i32) {
    %c0_i32 = arith.constant 0 : i32
    return %arg0, %arg1 : i32, i32
  }
  func.func @transform_3(%arg0: i32, %arg1: i32, %arg2: i32) -> (i32, i32) {
    %c0_i32 = arith.constant 0 : i32
    return %arg0, %arg1 : i32, i32
  }
}

module attributes {stable_mosaic.version = 11 : i64} {
  func.func @_affine_act_kernel(%arg0: i32, %arg1: memref<32x128xbf16, #tpu.memory_space<vmem>>, %arg2: memref<1x128xf32, #tpu.memory_space<vmem>>, %arg3: memref<1x128xf32, #tpu.memory_space<vmem>>, %arg4: memref<32x128xbf16, #tpu.memory_space<vmem>>) attributes {dimension_semantics = [#tpu.dimension_semantics<parallel>], iteration_bounds = array<i64: 1>, scalar_prefetch = 0 : i64, scratch_operands = 0 : i64, tpu.core_type = #tpu.core_type<tc>, window_params = [{transform_indices = @transform_0, window_bounds = array<i64: 32, 128>}, {pipeline_mode = #tpu.pipeline_mode<synchronous>, transform_indices = @transform_1, window_bounds = array<i64: 1, 128>}, {pipeline_mode = #tpu.pipeline_mode<synchronous>, transform_indices = @transform_2, window_bounds = array<i64: 1, 128>}, {transform_indices = @transform_3, window_bounds = array<i64: 32, 128>}]} {
    %c0 = arith.constant 0 : index
    %c0_0 = arith.constant 0 : index
    %0 = vector.load %arg1[%c0, %c0_0] : memref<32x128xbf16, #tpu.memory_space<vmem>>, vector<32x128xbf16>
    %1 = arith.extf %0 : vector<32x128xbf16> to vector<32x128xf32>
    %c0_1 = arith.constant 0 : index
    %c0_2 = arith.constant 0 : index
    %2 = vector.load %arg2[%c0_1, %c0_2] : memref<1x128xf32, #tpu.memory_space<vmem>>, vector<1x128xf32>
    %3 = vector.broadcast %2 : vector<1x128xf32> to vector<32x128xf32>
    %4 = arith.mulf %1, %3 : vector<32x128xf32>
    %c0_3 = arith.constant 0 : index
    %c0_4 = arith.constant 0 : index
    %5 = vector.load %arg3[%c0_3, %c0_4] : memref<1x128xf32, #tpu.memory_space<vmem>>, vector<1x128xf32>
    %6 = vector.broadcast %5 : vector<1x128xf32> to vector<32x128xf32>
    %7 = arith.addf %4, %6 : vector<32x128xf32>
    %8 = arith.truncf %7 : vector<32x128xf32> to vector<32x128xbf16>
    %c0_5 = arith.constant 0 : index
    %c0_6 = arith.constant 0 : index
    %9 = vector.load %arg4[%c0_5, %c0_6] : memref<32x128xbf16, #tpu.memory_space<vmem>>, vector<32x128xbf16>
    tpu.vector_store %arg4[%c0_5, %c0_6], %8 {strides = array<i32>} : memref<32x128xbf16, #tpu.memory_space<vmem>>, vector<32x128xbf16>,
    return
  }
  func.func @transform_0(%arg0: i32) -> (i32, i32) {
    %c0_i32 = arith.constant 0 : i32
    %c0_i32_0 = arith.constant 0 : i32
    return %arg0, %c0_i32 : i32, i32
  }
  func.func @transform_1(%arg0: i32) -> (i32, i32) {
    %c0_i32 = arith.constant 0 : i32
    %c0_i32_0 = arith.constant 0 : i32
    %c0_i32_1 = arith.constant 0 : i32
    return %c0_i32, %c0_i32_0 : i32, i32
  }
  func.func @transform_2(%arg0: i32) -> (i32, i32) {
    %c0_i32 = arith.constant 0 : i32
    %c0_i32_0 = arith.constant 0 : i32
    %c0_i32_1 = arith.constant 0 : i32
    return %c0_i32, %c0_i32_0 : i32, i32
  }
  func.func @transform_3(%arg0: i32) -> (i32, i32) {
    %c0_i32 = arith.constant 0 : i32
    %c0_i32_0 = arith.constant 0 : i32
    return %arg0, %c0_i32 : i32, i32
  }
}

module attributes {stable_mosaic.version = 11 : i64} {
  func.func @_mm_kernel(%arg0: i32, %arg1: i32, %arg2: i32, %arg3: memref<64x128xbf16, #tpu.memory_space<vmem>>, %arg4: memref<128x128xbf16, #tpu.memory_space<vmem>>, %arg5: memref<64x128xbf16, #tpu.memory_space<vmem>>, %arg6: memref<64x128xf32, #tpu.memory_space<vmem>>) attributes {dimension_semantics = [#tpu.dimension_semantics<parallel>, #tpu.dimension_semantics<parallel>, #tpu.dimension_semantics<arbitrary>], iteration_bounds = array<i64: 1, 1, 1>, scalar_prefetch = 0 : i64, scratch_operands = 1 : i64, tpu.core_type = #tpu.core_type<tc>, window_params = [{transform_indices = @transform_0, window_bounds = array<i64: 64, 128>}, {transform_indices = @transform_1, window_bounds = array<i64: 128, 128>}, {transform_indices = @transform_2, window_bounds = array<i64: 64, 128>}]} {
    %c0_i32 = arith.constant 0 : i32
    %0 = arith.cmpi eq, %arg2, %c0_i32 : i32
    %1 = arith.extui %0 : i1 to i32
    %c0_i32_0 = arith.constant 0 : i32
    %2 = arith.cmpi ne, %1, %c0_i32_0 : i32
    scf.if %2 {
      %cst_10 = arith.constant 0.000000e+00 : f32
      %12 = vector.broadcast %cst_10 : f32 to vector<64x128xf32>
      %c0_11 = arith.constant 0 : index
      %c0_12 = arith.constant 0 : index
      %13 = vector.load %arg6[%c0_11, %c0_12] : memref<64x128xf32, #tpu.memory_space<vmem>>, vector<64x128xf32>
      tpu.vector_store %arg6[%c0_11, %c0_12], %12 {strides = array<i32>} : memref<64x128xf32, #tpu.memory_space<vmem>>, vector<64x128xf32>,
    } else {
    }
    %c0 = arith.constant 0 : index
    %c0_1 = arith.constant 0 : index
    %3 = vector.load %arg6[%c0, %c0_1] : memref<64x128xf32, #tpu.memory_space<vmem>>, vector<64x128xf32>
    %c0_2 = arith.constant 0 : index
    %c0_3 = arith.constant 0 : index
    %4 = vector.load %arg3[%c0_2, %c0_3] : memref<64x128xbf16, #tpu.memory_space<vmem>>, vector<64x128xbf16>
    %c0_4 = arith.constant 0 : index
    %c0_5 = arith.constant 0 : index
    %5 = vector.load %arg4[%c0_4, %c0_5] : memref<128x128xbf16, #tpu.memory_space<vmem>>, vector<128x128xbf16>
    %cst = arith.constant dense<0.000000e+00> : vector<64x128xf32>
    %6 = tpu.matmul %4, %5, %cst {dimension_numbers = #tpu.dot_dimension_numbers<[1], [0], [0], [1], [0, 0, 1, 1], [], []>} : vector<64x128xbf16>, vector<128x128xbf16>, vector<64x128xf32> -> vector<64x128xf32>
    %7 = arith.addf %3, %6 : vector<64x128xf32>
    %c0_6 = arith.constant 0 : index
    %c0_7 = arith.constant 0 : index
    %8 = vector.load %arg6[%c0_6, %c0_7] : memref<64x128xf32, #tpu.memory_space<vmem>>, vector<64x128xf32>
    tpu.vector_store %arg6[%c0_6, %c0_7], %7 {strides = array<i32>} : memref<64x128xf32, #tpu.memory_space<vmem>>, vector<64x128xf32>,
    %c0_i32_8 = arith.constant 0 : i32
    %9 = arith.cmpi eq, %arg2, %c0_i32_8 : i32
    %10 = arith.extui %9 : i1 to i32
    %c0_i32_9 = arith.constant 0 : i32
    %11 = arith.cmpi ne, %10, %c0_i32_9 : i32
    scf.if %11 {
      %c0_10 = arith.constant 0 : index
      %c0_11 = arith.constant 0 : index
      %12 = vector.load %arg6[%c0_10, %c0_11] : memref<64x128xf32, #tpu.memory_space<vmem>>, vector<64x128xf32>
      %13 = arith.truncf %12 : vector<64x128xf32> to vector<64x128xbf16>
      %c0_12 = arith.constant 0 : index
      %c0_13 = arith.constant 0 : index
      %14 = vector.load %arg5[%c0_12, %c0_13] : memref<64x128xbf16, #tpu.memory_space<vmem>>, vector<64x128xbf16>
      tpu.vector_store %arg5[%c0_12, %c0_13], %13 {strides = array<i32>} : memref<64x128xbf16, #tpu.memory_space<vmem>>, vector<64x128xbf16>,
    } else {
    }
    return
  }
  func.func @transform_0(%arg0: i32, %arg1: i32, %arg2: i32) -> (i32, i32) {
    %c0_i32 = arith.constant 0 : i32
    return %arg0, %arg2 : i32, i32
  }
  func.func @transform_1(%arg0: i32, %arg1: i32, %arg2: i32) -> (i32, i32) {
    %c0_i32 = arith.constant 0 : i32
    return %arg2, %arg1 : i32, i32
  }
  func.func @transform_2(%arg0: i32, %arg1: i32, %arg2: i32) -> (i32, i32) {
    %c0_i32 = arith.constant 0 : i32
    return %arg0, %arg1 : i32, i32
  }
}

module attributes {stable_mosaic.version = 11 : i64} {
  func.func @_affine_act_kernel(%arg0: i32, %arg1: memref<128x128xbf16, #tpu.memory_space<vmem>>, %arg2: memref<1x128xf32, #tpu.memory_space<vmem>>, %arg3: memref<1x128xf32, #tpu.memory_space<vmem>>, %arg4: memref<128x128xbf16, #tpu.memory_space<vmem>>) attributes {dimension_semantics = [#tpu.dimension_semantics<parallel>], iteration_bounds = array<i64: 1>, scalar_prefetch = 0 : i64, scratch_operands = 0 : i64, tpu.core_type = #tpu.core_type<tc>, window_params = [{transform_indices = @transform_0, window_bounds = array<i64: 128, 128>}, {pipeline_mode = #tpu.pipeline_mode<synchronous>, transform_indices = @transform_1, window_bounds = array<i64: 1, 128>}, {pipeline_mode = #tpu.pipeline_mode<synchronous>, transform_indices = @transform_2, window_bounds = array<i64: 1, 128>}, {transform_indices = @transform_3, window_bounds = array<i64: 128, 128>}]} {
    %c0 = arith.constant 0 : index
    %c0_0 = arith.constant 0 : index
    %0 = vector.load %arg1[%c0, %c0_0] : memref<128x128xbf16, #tpu.memory_space<vmem>>, vector<128x128xbf16>
    %1 = arith.extf %0 : vector<128x128xbf16> to vector<128x128xf32>
    %c0_1 = arith.constant 0 : index
    %c0_2 = arith.constant 0 : index
    %2 = vector.load %arg2[%c0_1, %c0_2] : memref<1x128xf32, #tpu.memory_space<vmem>>, vector<1x128xf32>
    %3 = vector.broadcast %2 : vector<1x128xf32> to vector<128x128xf32>
    %4 = arith.mulf %1, %3 : vector<128x128xf32>
    %c0_3 = arith.constant 0 : index
    %c0_4 = arith.constant 0 : index
    %5 = vector.load %arg3[%c0_3, %c0_4] : memref<1x128xf32, #tpu.memory_space<vmem>>, vector<1x128xf32>
    %6 = vector.broadcast %5 : vector<1x128xf32> to vector<128x128xf32>
    %7 = arith.addf %4, %6 : vector<128x128xf32>
    %8 = arith.truncf %7 : vector<128x128xf32> to vector<128x128xbf16>
    %c0_5 = arith.constant 0 : index
    %c0_6 = arith.constant 0 : index
    %9 = vector.load %arg4[%c0_5, %c0_6] : memref<128x128xbf16, #tpu.memory_space<vmem>>, vector<128x128xbf16>
    tpu.vector_store %arg4[%c0_5, %c0_6], %8 {strides = array<i32>} : memref<128x128xbf16, #tpu.memory_space<vmem>>, vector<128x128xbf16>,
    return
  }
  func.func @transform_0(%arg0: i32) -> (i32, i32) {
    %c0_i32 = arith.constant 0 : i32
    %c0_i32_0 = arith.constant 0 : i32
    return %arg0, %c0_i32 : i32, i32
  }
  func.func @transform_1(%arg0: i32) -> (i32, i32) {
    %c0_i32 = arith.constant 0 : i32
    %c0_i32_0 = arith.constant 0 : i32
    %c0_i32_1 = arith.constant 0 : i32
    return %c0_i32, %c0_i32_0 : i32, i32
  }
  func.func @transform_2(%arg0: i32) -> (i32, i32) {
    %c0_i32 = arith.constant 0 : i32
    %c0_i32_0 = arith.constant 0 : i32
    %c0_i32_1 = arith.constant 0 : i32
    return %c0_i32, %c0_i32_0 : i32, i32
  }
  func.func @transform_3(%arg0: i32) -> (i32, i32) {
    %c0_i32 = arith.constant 0 : i32
    %c0_i32_0 = arith.constant 0 : i32
    return %arg0, %c0_i32 : i32, i32
  }
}

module attributes {stable_mosaic.version = 11 : i64} {
  func.func @_mm_kernel(%arg0: i32, %arg1: i32, %arg2: i32, %arg3: memref<176x128xbf16, #tpu.memory_space<vmem>>, %arg4: memref<128x128xbf16, #tpu.memory_space<vmem>>, %arg5: memref<176x128xbf16, #tpu.memory_space<vmem>>, %arg6: memref<176x128xf32, #tpu.memory_space<vmem>>) attributes {dimension_semantics = [#tpu.dimension_semantics<parallel>, #tpu.dimension_semantics<parallel>, #tpu.dimension_semantics<arbitrary>], iteration_bounds = array<i64: 1, 1, 1>, scalar_prefetch = 0 : i64, scratch_operands = 1 : i64, tpu.core_type = #tpu.core_type<tc>, window_params = [{transform_indices = @transform_0, window_bounds = array<i64: 176, 128>}, {transform_indices = @transform_1, window_bounds = array<i64: 128, 128>}, {transform_indices = @transform_2, window_bounds = array<i64: 176, 128>}]} {
    %c0_i32 = arith.constant 0 : i32
    %0 = arith.cmpi eq, %arg2, %c0_i32 : i32
    %1 = arith.extui %0 : i1 to i32
    %c0_i32_0 = arith.constant 0 : i32
    %2 = arith.cmpi ne, %1, %c0_i32_0 : i32
    scf.if %2 {
      %cst_10 = arith.constant 0.000000e+00 : f32
      %12 = vector.broadcast %cst_10 : f32 to vector<176x128xf32>
      %c0_11 = arith.constant 0 : index
      %c0_12 = arith.constant 0 : index
      %13 = vector.load %arg6[%c0_11, %c0_12] : memref<176x128xf32, #tpu.memory_space<vmem>>, vector<176x128xf32>
      tpu.vector_store %arg6[%c0_11, %c0_12], %12 {strides = array<i32>} : memref<176x128xf32, #tpu.memory_space<vmem>>, vector<176x128xf32>,
    } else {
    }
    %c0 = arith.constant 0 : index
    %c0_1 = arith.constant 0 : index
    %3 = vector.load %arg6[%c0, %c0_1] : memref<176x128xf32, #tpu.memory_space<vmem>>, vector<176x128xf32>
    %c0_2 = arith.constant 0 : index
    %c0_3 = arith.constant 0 : index
    %4 = vector.load %arg3[%c0_2, %c0_3] : memref<176x128xbf16, #tpu.memory_space<vmem>>, vector<176x128xbf16>
    %c0_4 = arith.constant 0 : index
    %c0_5 = arith.constant 0 : index
    %5 = vector.load %arg4[%c0_4, %c0_5] : memref<128x128xbf16, #tpu.memory_space<vmem>>, vector<128x128xbf16>
    %cst = arith.constant dense<0.000000e+00> : vector<176x128xf32>
    %6 = tpu.matmul %4, %5, %cst {dimension_numbers = #tpu.dot_dimension_numbers<[1], [0], [0], [1], [0, 0, 1, 1], [], []>} : vector<176x128xbf16>, vector<128x128xbf16>, vector<176x128xf32> -> vector<176x128xf32>
    %7 = arith.addf %3, %6 : vector<176x128xf32>
    %c0_6 = arith.constant 0 : index
    %c0_7 = arith.constant 0 : index
    %8 = vector.load %arg6[%c0_6, %c0_7] : memref<176x128xf32, #tpu.memory_space<vmem>>, vector<176x128xf32>
    tpu.vector_store %arg6[%c0_6, %c0_7], %7 {strides = array<i32>} : memref<176x128xf32, #tpu.memory_space<vmem>>, vector<176x128xf32>,
    %c0_i32_8 = arith.constant 0 : i32
    %9 = arith.cmpi eq, %arg2, %c0_i32_8 : i32
    %10 = arith.extui %9 : i1 to i32
    %c0_i32_9 = arith.constant 0 : i32
    %11 = arith.cmpi ne, %10, %c0_i32_9 : i32
    scf.if %11 {
      %c0_10 = arith.constant 0 : index
      %c0_11 = arith.constant 0 : index
      %12 = vector.load %arg6[%c0_10, %c0_11] : memref<176x128xf32, #tpu.memory_space<vmem>>, vector<176x128xf32>
      %13 = math.tanh %12 : vector<176x128xf32>
      %14 = arith.truncf %13 : vector<176x128xf32> to vector<176x128xbf16>
      %c0_12 = arith.constant 0 : index
      %c0_13 = arith.constant 0 : index
      %15 = vector.load %arg5[%c0_12, %c0_13] : memref<176x128xbf16, #tpu.memory_space<vmem>>, vector<176x128xbf16>
      tpu.vector_store %arg5[%c0_12, %c0_13], %14 {strides = array<i32>} : memref<176x128xbf16, #tpu.memory_space<vmem>>, vector<176x128xbf16>,
    } else {
    }
    return
  }
  func.func @transform_0(%arg0: i32, %arg1: i32, %arg2: i32) -> (i32, i32) {
    %c0_i32 = arith.constant 0 : i32
    return %arg0, %arg2 : i32, i32
  }
  func.func @transform_1(%arg0: i32, %arg1: i32, %arg2: i32) -> (i32, i32) {
    %c0_i32 = arith.constant 0 : i32
    return %arg2, %arg1 : i32, i32
  }
  func.func @transform_2(%arg0: i32, %arg1: i32, %arg2: i32) -> (i32, i32) {
    %c0_i32 = arith.constant 0 : i32
    return %arg0, %arg1 : i32, i32
  }
}

</mosaic_0001>

<llo_original>
// kernel: forward.13
$region0: #{forward.13}
  #allocation0 [shape = 'u32[]', space=smem, size = 0x4, offset = 0x4, fixed_abs, tag = 'smem constant byte address 0x4 - core index']
  #allocation1 [shape = 'u32[72,128]{1,0:T(1,128)}', space=vmem, size = 0x9000, scoped, tag = 'internal scratch']
  #allocation2 [shape = 'f32[128,128]{1,0:T(8,128)}', space=vmem, size = 0x10000, scoped, tag = 'scratch operand']
  %s0 = inlined_call_operand.vmem [shape: bf16[128,128], index: 0, kind: input, shape index: {}]
  %s1 = inlined_call_operand.vmem [shape: bf16[128,128], index: 1, kind: input, shape index: {}]
  %s2 = inlined_call_operand.vmem [shape: bf16[128,128], index: 2, kind: output, shape index: {}]
  %s3 = sld [smem:[#allocation0]]
  $region26: #{forward.13} parent=0
    _
  %s5 = ssub.s32 1, %s3
  %s6 = scalar_select 0, %s5, %s3
  // Predicated region
  $region2: #{forward.13} parent=0 // pred_check
    _
  $region3: #{forward.13} parent=0 // pred_check_branch
    %8 = sbr.rel (0) target = $region5
  $region4: #{forward.13} parent=0 // pred_region
    _
  $region5: #{forward.13} parent=0 // pred_fallthru
    _
  // Predicated region
  $region6: #{forward.13} parent=0 // pred_check
    _
  $region7: #{forward.13} parent=0 // pred_check_branch
    %10 = sbr.rel (0) target = $region9
  $region8: #{forward.13} parent=0 // pred_region
    _
  $region9: #{forward.13} parent=0 // pred_fallthru
    _
  %p11 = scmp.eq.s32.totalorder 0, 0
  // Predicated region
  $region10: #{forward.13} parent=0 // pred_check
    %p12 = pneg %p11
  $region11: #{forward.13} parent=0 // pred_check_branch
    %14 = sbr.rel (%p12) target = $region13
  $region12: #{forward.13} parent=0 // pred_region
    %15 = vst [vmem:[#allocation2] sm:$0xff] 0.0
    %16 = vst [vmem:[#allocation2 + $0x8] sm:$0xff] 0.0
    %17 = vst [vmem:[#allocation2 + $0x10] sm:$0xff] 0.0
    %18 = vst [vmem:[#allocation2 + $0x18] sm:$0xff] 0.0
    %19 = vst [vmem:[#allocation2 + $0x20] sm:$0xff] 0.0
    %20 = vst [vmem:[#allocation2 + $0x28] sm:$0xff] 0.0
    %21 = vst [vmem:[#allocation2 + $0x30] sm:$0xff] 0.0
    %22 = vst [vmem:[#allocation2 + $0x38] sm:$0xff] 0.0
    %23 = vst [vmem:[#allocation2 + $0x40] sm:$0xff] 0.0
    %24 = vst [vmem:[#allocation2 + $0x48] sm:$0xff] 0.0
    %25 = vst [vmem:[#allocation2 + $0x50] sm:$0xff] 0.0
    %26 = vst [vmem:[#allocation2 + $0x58] sm:$0xff] 0.0
    %27 = vst [vmem:[#allocation2 + $0x60] sm:$0xff] 0.0
    %28 = vst [vmem:[#allocation2 + $0x68] sm:$0xff] 0.0
    %29 = vst [vmem:[#allocation2 + $0x70] sm:$0xff] 0.0
    %30 = vst [vmem:[#allocation2 + $0x78] sm:$0xff] 0.0
  $region13: #{forward.13} parent=0 // pred_fallthru
    _
  %v31 = vld [vmem:[#allocation2] sm:$0xff]
  %v32 = vld [vmem:[#allocation2 + $0x8] sm:$0xff]
  %v33 = vld [vmem:[#allocation2 + $0x10] sm:$0xff]
  %v34 = vld [vmem:[#allocation2 + $0x18] sm:$0xff]
  %v35 = vld [vmem:[#allocation2 + $0x20] sm:$0xff]
  %v36 = vld [vmem:[#allocation2 + $0x28] sm:$0xff]
  %v37 = vld [vmem:[#allocation2 + $0x30] sm:$0xff]
  %v38 = vld [vmem:[#allocation2 + $0x38] sm:$0xff]
  %v39 = vld [vmem:[#allocation2 + $0x40] sm:$0xff]
  %v40 = vld [vmem:[#allocation2 + $0x48] sm:$0xff]
  %v41 = vld [vmem:[#allocation2 + $0x50] sm:$0xff]
  %v42 = vld [vmem:[#allocation2 + $0x58] sm:$0xff]
  %v43 = vld [vmem:[#allocation2 + $0x60] sm:$0xff]
  %v44 = vld [vmem:[#allocation2 + $0x68] sm:$0xff]
  %v45 = vld [vmem:[#allocation2 + $0x70] sm:$0xff]
  %v46 = vld [vmem:[#allocation2 + $0x78] sm:$0xff]
  %v47 = vld [vmem:[%s0] sm:$0xf]
  %v48 = vld [vmem:[%s0 + $0x4] sm:$0xf]
  %v49 = vld [vmem:[%s0 + $0x8] sm:$0xf]
  %v50 = vld [vmem:[%s0 + $0xc] sm:$0xf]
  %v51 = vld [vmem:[%s0 + $0x10] sm:$0xf]
  %v52 = vld [vmem:[%s0 + $0x14] sm:$0xf]
  %v53 = vld [vmem:[%s0 + $0x18] sm:$0xf]
  %v54 = vld [vmem:[%s0 + $0x1c] sm:$0xf]
  %v55 = vld [vmem:[%s0 + $0x20] sm:$0xf]
  %v56 = vld [vmem:[%s0 + $0x24] sm:$0xf]
  %v57 = vld [vmem:[%s0 + $0x28] sm:$0xf]
  %v58 = vld [vmem:[%s0 + $0x2c] sm:$0xf]
  %v59 = vld [vmem:[%s0 + $0x30] sm:$0xf]
  %v60 = vld [vmem:[%s0 + $0x34] sm:$0xf]
  %v61 = vld [vmem:[%s0 + $0x38] sm:$0xf]
  %v62 = vld [vmem:[%s0 + $0x3c] sm:$0xf]
  %v63 = vld [vmem:[%s1] sm:$0xf]
  %v64 = vld [vmem:[%s1 + $0x4] sm:$0xf]
  %v65 = vld [vmem:[%s1 + $0x8] sm:$0xf]
  %v66 = vld [vmem:[%s1 + $0xc] sm:$0xf]
  %v67 = vld [vmem:[%s1 + $0x10] sm:$0xf]
  %v68 = vld [vmem:[%s1 + $0x14] sm:$0xf]
  %v69 = vld [vmem:[%s1 + $0x18] sm:$0xf]
  %v70 = vld [vmem:[%s1 + $0x1c] sm:$0xf]
  %v71 = vld [vmem:[%s1 + $0x20] sm:$0xf]
  %v72 = vld [vmem:[%s1 + $0x24] sm:$0xf]
  %v73 = vld [vmem:[%s1 + $0x28] sm:$0xf]
  %v74 = vld [vmem:[%s1 + $0x2c] sm:$0xf]
  %v75 = vld [vmem:[%s1 + $0x30] sm:$0xf]
  %v76 = vld [vmem:[%s1 + $0x34] sm:$0xf]
  %v77 = vld [vmem:[%s1 + $0x38] sm:$0xf]
  %v78 = vld [vmem:[%s1 + $0x3c] sm:$0xf]
  %v95 = vunpack.c.l.b16 %v47
  %v96 = vunpack.c.l.b16 %v48
  %v97 = vunpack.c.l.b16 %v49
  %v98 = vunpack.c.l.b16 %v50
  %v99 = vunpack.c.l.b16 %v51
  %v100 = vunpack.c.l.b16 %v52
  %v101 = vunpack.c.l.b16 %v53
  %v102 = vunpack.c.l.b16 %v54
  %v103 = vunpack.c.l.b16 %v55
  %v104 = vunpack.c.l.b16 %v56
  %v105 = vunpack.c.l.b16 %v57
  %v106 = vunpack.c.l.b16 %v58
  %v107 = vunpack.c.l.b16 %v59
  %v108 = vunpack.c.l.b16 %v60
  %v109 = vunpack.c.l.b16 %v61
  %v110 = vunpack.c.l.b16 %v62
  %v111 = vpack.c.b16 %v96, %v95
  %v112 = vpack.c.b16 %v98, %v97
  %v113 = vpack.c.b16 %v100, %v99
  %v114 = vpack.c.b16 %v102, %v101
  %v115 = vpack.c.b16 %v104, %v103
  %v116 = vpack.c.b16 %v106, %v105
  %v117 = vpack.c.b16 %v108, %v107
  %v118 = vpack.c.b16 %v110, %v109
  %v143 = vunpack.c.l.b16 %v63
  %v144 = vunpack.c.l.b16 %v64
  %v145 = vunpack.c.l.b16 %v65
  %v146 = vunpack.c.l.b16 %v66
  %v147 = vunpack.c.l.b16 %v67
  %v148 = vunpack.c.l.b16 %v68
  %v149 = vunpack.c.l.b16 %v69
  %v150 = vunpack.c.l.b16 %v70
  %v151 = vunpack.c.l.b16 %v71
  %v152 = vunpack.c.l.b16 %v72
  %v153 = vunpack.c.l.b16 %v73
  %v154 = vunpack.c.l.b16 %v74
  %v155 = vunpack.c.l.b16 %v75
  %v156 = vunpack.c.l.b16 %v76
  %v157 = vunpack.c.l.b16 %v77
  %v158 = vunpack.c.l.b16 %v78
  %v159 = vpack.c.b16 %v144, %v143
  %v160 = vpack.c.b16 %v146, %v145
  %v161 = vpack.c.b16 %v148, %v147
  %v162 = vpack.c.b16 %v150, %v149
  %v163 = vpack.c.b16 %v152, %v151
  %v164 = vpack.c.b16 %v154, %v153
  %v165 = vpack.c.b16 %v156, %v155
  %v166 = vpack.c.b16 %v158, %v157
  %175 = vmatpush.bf16.msra.mxu0 %v166
  %176 = vmatpush.bf16.msra.mxu0 %v165
  %177 = vmatpush.bf16.msra.mxu0 %v164
  %178 = vmatpush.bf16.msra.mxu0 %v163
  %179 = vmatpush.bf16.msra.mxu0 %v162
  %180 = vmatpush.bf16.msra.mxu0 %v161
  %181 = vmatpush.bf16.msra.mxu0 %v160
  %182 = vmatpush.bf16.msra.mxu0 %v159
  %183 = vmatmul.bf16.gmra.mxu0 %v111
  %v184 = vpop.f32.mrf.mxu0
  %v185 = vadd.f32 0.0, %v184
  %v186 = vpop.f32.mrf.mxu0
  %v187 = vadd.f32 0.0, %v186
  %188 = vmatmul.bf16.gmra.mxu0 %v112
  %v189 = vpop.f32.mrf.mxu0
  %v190 = vadd.f32 0.0, %v189
  %v191 = vpop.f32.mrf.mxu0
  %v192 = vadd.f32 0.0, %v191
  %193 = vmatmul.bf16.gmra.mxu0 %v113
  %v194 = vpop.f32.mrf.mxu0
  %v195 = vadd.f32 0.0, %v194
  %v196 = vpop.f32.mrf.mxu0
  %v197 = vadd.f32 0.0, %v196
  %198 = vmatmul.bf16.gmra.mxu0 %v114
  %v199 = vpop.f32.mrf.mxu0
  %v200 = vadd.f32 0.0, %v199
  %v201 = vpop.f32.mrf.mxu0
  %v202 = vadd.f32 0.0, %v201
  %203 = vmatmul.bf16.gmra.mxu0 %v115
  %v204 = vpop.f32.mrf.mxu0
  %v205 = vadd.f32 0.0, %v204
  %v206 = vpop.f32.mrf.mxu0
  %v207 = vadd.f32 0.0, %v206
  %208 = vmatmul.bf16.gmra.mxu0 %v116
  %v209 = vpop.f32.mrf.mxu0
  %v210 = vadd.f32 0.0, %v209
  %v211 = vpop.f32.mrf.mxu0
  %v212 = vadd.f32 0.0, %v211
  %213 = vmatmul.bf16.gmra.mxu0 %v117
  %v214 = vpop.f32.mrf.mxu0
  %v215 = vadd.f32 0.0, %v214
  %v216 = vpop.f32.mrf.mxu0
  %v217 = vadd.f32 0.0, %v216
  %218 = vmatmul.bf16.gmra.mxu0 %v118
  %v219 = vpop.f32.mrf.mxu0
  %v220 = vadd.f32 0.0, %v219
  %v221 = vpop.f32.mrf.mxu0
  %v222 = vadd.f32 0.0, %v221
  %223 = vdwg.mxu0
  %v224 = vadd.f32 %v31, %v185
  %v225 = vadd.f32 %v32, %v187
  %v226 = vadd.f32 %v33, %v190
  %v227 = vadd.f32 %v34, %v192
  %v228 = vadd.f32 %v35, %v195
  %v229 = vadd.f32 %v36, %v197
  %v230 = vadd.f32 %v37, %v200
  %v231 = vadd.f32 %v38, %v202
  %v232 = vadd.f32 %v39, %v205
  %v233 = vadd.f32 %v40, %v207
  %v234 = vadd.f32 %v41, %v210
  %v235 = vadd.f32 %v42, %v212
  %v236 = vadd.f32 %v43, %v215
  %v237 = vadd.f32 %v44, %v217
  %v238 = vadd.f32 %v45, %v220
  %v239 = vadd.f32 %v46, %v222
  %240 = vst [vmem:[#allocation2] sm:$0xff] %v224
  %241 = vst [vmem:[#allocation2 + $0x8] sm:$0xff] %v225
  %242 = vst [vmem:[#allocation2 + $0x10] sm:$0xff] %v226
  %243 = vst [vmem:[#allocation2 + $0x18] sm:$0xff] %v227
  %244 = vst [vmem:[#allocation2 + $0x20] sm:$0xff] %v228
  %245 = vst [vmem:[#allocation2 + $0x28] sm:$0xff] %v229
  %246 = vst [vmem:[#allocation2 + $0x30] sm:$0xff] %v230
  %247 = vst [vmem:[#allocation2 + $0x38] sm:$0xff] %v231
  %248 = vst [vmem:[#allocation2 + $0x40] sm:$0xff] %v232
  %249 = vst [vmem:[#allocation2 + $0x48] sm:$0xff] %v233
  %250 = vst [vmem:[#allocation2 + $0x50] sm:$0xff] %v234
  %251 = vst [vmem:[#allocation2 + $0x58] sm:$0xff] %v235
  %252 = vst [vmem:[#allocation2 + $0x60] sm:$0xff] %v236
  %253 = vst [vmem:[#allocation2 + $0x68] sm:$0xff] %v237
  %254 = vst [vmem:[#allocation2 + $0x70] sm:$0xff] %v238
  %255 = vst [vmem:[#allocation2 + $0x78] sm:$0xff] %v239
  // Predicated region
  $region14: #{forward.13} parent=0 // pred_check
    %p256 = pneg %p11
  $region15: #{forward.13} parent=0 // pred_check_branch
    %258 = sbr.rel (%p256) target = $region17
  $region16: #{forward.13} parent=0 // pred_region
    %v259 = vld [vmem:[#allocation2] sm:$0xff]
    %v260 = vld [vmem:[#allocation2 + $0x8] sm:$0xff]
    %v261 = vld [vmem:[#allocation2 + $0x10] sm:$0xff]
    %v262 = vld [vmem:[#allocation2 + $0x18] sm:$0xff]
    %v263 = vld [vmem:[#allocation2 + $0x20] sm:$0xff]
    %v264 = vld [vmem:[#allocation2 + $0x28] sm:$0xff]
    %v265 = vld [vmem:[#allocation2 + $0x30] sm:$0xff]
    %v266 = vld [vmem:[#allocation2 + $0x38] sm:$0xff]
    %v267 = vld [vmem:[#allocation2 + $0x40] sm:$0xff]
    %v268 = vld [vmem:[#allocation2 + $0x48] sm:$0xff]
    %v269 = vld [vmem:[#allocation2 + $0x50] sm:$0xff]
    %v270 = vld [vmem:[#allocation2 + $0x58] sm:$0xff]
    %v271 = vld [vmem:[#allocation2 + $0x60] sm:$0xff]
    %v272 = vld [vmem:[#allocation2 + $0x68] sm:$0xff]
    %v273 = vld [vmem:[#allocation2 + $0x70] sm:$0xff]
    %v274 = vld [vmem:[#allocation2 + $0x78] sm:$0xff]
    %vm275 = vcmp.ge.f32.partialorder %v259, 0.0
    %vm276 = vcmp.ge.f32.partialorder %v260, 0.0
    %vm277 = vcmp.ge.f32.partialorder %v261, 0.0
    %vm278 = vcmp.ge.f32.partialorder %v262, 0.0
    %vm279 = vcmp.ge.f32.partialorder %v263, 0.0
    %vm280 = vcmp.ge.f32.partialorder %v264, 0.0
    %vm281 = vcmp.ge.f32.partialorder %v265, 0.0
    %vm282 = vcmp.ge.f32.partialorder %v266, 0.0
    %vm283 = vcmp.ge.f32.partialorder %v267, 0.0
    %vm284 = vcmp.ge.f32.partialorder %v268, 0.0
    %vm285 = vcmp.ge.f32.partialorder %v269, 0.0
    %vm286 = vcmp.ge.f32.partialorder %v270, 0.0
    %vm287 = vcmp.ge.f32.partialorder %v271, 0.0
    %vm288 = vcmp.ge.f32.partialorder %v272, 0.0
    %vm289 = vcmp.ge.f32.partialorder %v273, 0.0
    %vm290 = vcmp.ge.f32.partialorder %v274, 0.0
    %v291 = vmul.f32 %v259, 0.2
    %v292 = vmul.f32 %v260, 0.2
    %v293 = vmul.f32 %v261, 0.2
    %v294 = vmul.f32 %v262, 0.2
    %v295 = vmul.f32 %v263, 0.2
    %v296 = vmul.f32 %v264, 0.2
    %v297 = vmul.f32 %v265, 0.2
    %v298 = vmul.f32 %v266, 0.2
    %v299 = vmul.f32 %v267, 0.2
    %v300 = vmul.f32 %v268, 0.2
    %v301 = vmul.f32 %v269, 0.2
    %v302 = vmul.f32 %v270, 0.2
    %v303 = vmul.f32 %v271, 0.2
    %v304 = vmul.f32 %v272, 0.2
    %v305 = vmul.f32 %v273, 0.2
    %v306 = vmul.f32 %v274, 0.2
    %v307 = vsel %vm275, %v259, %v291
    %v308 = vsel %vm276, %v260, %v292
    %v309 = vsel %vm277, %v261, %v293
    %v310 = vsel %vm278, %v262, %v294
    %v311 = vsel %vm279, %v263, %v295
    %v312 = vsel %vm280, %v264, %v296
    %v313 = vsel %vm281, %v265, %v297
    %v314 = vsel %vm282, %v266, %v298
    %v315 = vsel %vm283, %v267, %v299
    %v316 = vsel %vm284, %v268, %v300
    %v317 = vsel %vm285, %v269, %v301
    %v318 = vsel %vm286, %v270, %v302
    %v319 = vsel %vm287, %v271, %v303
    %v320 = vsel %vm288, %v272, %v304
    %v321 = vsel %vm289, %v273, %v305
    %v322 = vsel %vm290, %v274, %v306
    %v323 = vpack.c.bf16 %v307, %v307
    %v324 = vpack.c.bf16 %v308, %v308
    %v325 = vpack.c.bf16 %v309, %v309
    %v326 = vpack.c.bf16 %v310, %v310
    %v327 = vpack.c.bf16 %v311, %v311
    %v328 = vpack.c.bf16 %v312, %v312
    %v329 = vpack.c.bf16 %v313, %v313
    %v330 = vpack.c.bf16 %v314, %v314
    %v331 = vpack.c.bf16 %v315, %v315
    %v332 = vpack.c.bf16 %v316, %v316
    %v333 = vpack.c.bf16 %v317, %v317
    %v334 = vpack.c.bf16 %v318, %v318
    %v335 = vpack.c.bf16 %v319, %v319
    %v336 = vpack.c.bf16 %v320, %v320
    %v337 = vpack.c.bf16 %v321, %v321
    %v338 = vpack.c.bf16 %v322, %v322
    %339 = vst [vmem:[%s2] sm:$0xf] %v323
    %340 = vst [vmem:[%s2 + $0x4] sm:$0xf] %v324
    %341 = vst [vmem:[%s2 + $0x8] sm:$0xf] %v325
    %342 = vst [vmem:[%s2 + $0xc] sm:$0xf] %v326
    %343 = vst [vmem:[%s2 + $0x10] sm:$0xf] %v327
    %344 = vst [vmem:[%s2 + $0x14] sm:$0xf] %v328
    %345 = vst [vmem:[%s2 + $0x18] sm:$0xf] %v329
    %346 = vst [vmem:[%s2 + $0x1c] sm:$0xf] %v330
    %347 = vst [vmem:[%s2 + $0x20] sm:$0xf] %v331
    %348 = vst [vmem:[%s2 + $0x24] sm:$0xf] %v332
    %349 = vst [vmem:[%s2 + $0x28] sm:$0xf] %v333
    %350 = vst [vmem:[%s2 + $0x2c] sm:$0xf] %v334
    %351 = vst [vmem:[%s2 + $0x30] sm:$0xf] %v335
    %352 = vst [vmem:[%s2 + $0x34] sm:$0xf] %v336
    %353 = vst [vmem:[%s2 + $0x38] sm:$0xf] %v337
    %354 = vst [vmem:[%s2 + $0x3c] sm:$0xf] %v338
  $region17: #{forward.13} parent=0 // pred_fallthru
    _
  // Predicated region
  $region18: #{forward.13} parent=0 // pred_check
    _
  $region19: #{forward.13} parent=0 // pred_check_branch
    %356 = sbr.rel (0) target = $region21
  $region20: #{forward.13} parent=0 // pred_region
    _
  $region21: #{forward.13} parent=0 // pred_fallthru
    _
  // Predicated region
  $region22: #{forward.13} parent=0 // pred_check
    _
  $region23: #{forward.13} parent=0 // pred_check_branch
    %358 = sbr.rel (0) target = $region25
  $region24: #{forward.13} parent=0 // pred_region
    _
  $region25: #{forward.13} parent=0 // pred_fallthru
    _

// kernel: forward.14
$region0: #{forward.14}
  #allocation0 [shape = 'u32[]', space=smem, size = 0x4, offset = 0x4, fixed_abs, tag = 'smem constant byte address 0x4 - core index']
  #allocation1 [shape = 'u32[72,128]{1,0:T(1,128)}', space=vmem, size = 0x9000, scoped, tag = 'internal scratch']
  #allocation2 [shape = 'f32[32,128]{1,0:T(8,128)}', space=vmem, size = 0x4000, scoped, tag = 'scratch operand']
  %s0 = inlined_call_operand.vmem [shape: bf16[32,128], index: 0, kind: input, shape index: {}]
  %s1 = inlined_call_operand.vmem [shape: bf16[128,128], index: 1, kind: input, shape index: {}]
  %s2 = inlined_call_operand.vmem [shape: bf16[32,128], index: 2, kind: output, shape index: {0}]
  %s3 = inlined_call_operand.vmem [shape: f32[8,128], index: 3, kind: output, shape index: {1}]
  %4 = xla_tuple %s2, %s3
  %s5 = sld [smem:[#allocation0]]
  $region34: #{forward.14} parent=0
    _
  %s7 = ssub.s32 1, %s5
  %s8 = scalar_select 0, %s7, %s5
  // Predicated region
  $region2: #{forward.14} parent=0 // pred_check
    _
  $region3: #{forward.14} parent=0 // pred_check_branch
    %10 = sbr.rel (0) target = $region5
  $region4: #{forward.14} parent=0 // pred_region
    _
  $region5: #{forward.14} parent=0 // pred_fallthru
    _
  // Predicated region
  $region6: #{forward.14} parent=0 // pred_check
    _
  $region7: #{forward.14} parent=0 // pred_check_branch
    %12 = sbr.rel (0) target = $region9
  $region8: #{forward.14} parent=0 // pred_region
    _
  $region9: #{forward.14} parent=0 // pred_fallthru
    _
  %p13 = scmp.eq.s32.totalorder 0, 0
  // Predicated region
  $region10: #{forward.14} parent=0 // pred_check
    %p14 = pneg %p13
  $region11: #{forward.14} parent=0 // pred_check_branch
    %16 = sbr.rel (%p14) target = $region13
  $region12: #{forward.14} parent=0 // pred_region
    %17 = vst [vmem:[#allocation2] sm:$0xff] 0.0
    %18 = vst [vmem:[#allocation2 + $0x8] sm:$0xff] 0.0
    %19 = vst [vmem:[#allocation2 + $0x10] sm:$0xff] 0.0
    %20 = vst [vmem:[#allocation2 + $0x18] sm:$0xff] 0.0
  $region13: #{forward.14} parent=0 // pred_fallthru
    _
  %v21 = vld [vmem:[#allocation2] sm:$0xff]
  %v22 = vld [vmem:[#allocation2 + $0x8] sm:$0xff]
  %v23 = vld [vmem:[#allocation2 + $0x10] sm:$0xff]
  %v24 = vld [vmem:[#allocation2 + $0x18] sm:$0xff]
  %v25 = vld [vmem:[%s0] sm:$0xf]
  %v26 = vld [vmem:[%s0 + $0x4] sm:$0xf]
  %v27 = vld [vmem:[%s0 + $0x8] sm:$0xf]
  %v28 = vld [vmem:[%s0 + $0xc] sm:$0xf]
  %v29 = vld [vmem:[%s1] sm:$0xf]
  %v30 = vld [vmem:[%s1 + $0x4] sm:$0xf]
  %v31 = vld [vmem:[%s1 + $0x8] sm:$0xf]
  %v32 = vld [vmem:[%s1 + $0xc] sm:$0xf]
  %v33 = vld [vmem:[%s1 + $0x10] sm:$0xf]
  %v34 = vld [vmem:[%s1 + $0x14] sm:$0xf]
  %v35 = vld [vmem:[%s1 + $0x18] sm:$0xf]
  %v36 = vld [vmem:[%s1 + $0x1c] sm:$0xf]
  %v37 = vld [vmem:[%s1 + $0x20] sm:$0xf]
  %v38 = vld [vmem:[%s1 + $0x24] sm:$0xf]
  %v39 = vld [vmem:[%s1 + $0x28] sm:$0xf]
  %v40 = vld [vmem:[%s1 + $0x2c] sm:$0xf]
  %v41 = vld [vmem:[%s1 + $0x30] sm:$0xf]
  %v42 = vld [vmem:[%s1 + $0x34] sm:$0xf]
  %v43 = vld [vmem:[%s1 + $0x38] sm:$0xf]
  %v44 = vld [vmem:[%s1 + $0x3c] sm:$0xf]
  %v49 = vunpack.c.l.b16 %v25
  %v50 = vunpack.c.l.b16 %v26
  %v51 = vunpack.c.l.b16 %v27
  %v52 = vunpack.c.l.b16 %v28
  %v53 = vpack.c.b16 %v50, %v49
  %v54 = vpack.c.b16 %v52, %v51
  %v73 = vunpack.c.l.b16 %v29
  %v74 = vunpack.c.l.b16 %v30
  %v75 = vunpack.c.l.b16 %v31
  %v76 = vunpack.c.l.b16 %v32
  %v77 = vunpack.c.l.b16 %v33
  %v78 = vunpack.c.l.b16 %v34
  %v79 = vunpack.c.l.b16 %v35
  %v80 = vunpack.c.l.b16 %v36
  %v81 = vunpack.c.l.b16 %v37
  %v82 = vunpack.c.l.b16 %v38
  %v83 = vunpack.c.l.b16 %v39
  %v84 = vunpack.c.l.b16 %v40
  %v85 = vunpack.c.l.b16 %v41
  %v86 = vunpack.c.l.b16 %v42
  %v87 = vunpack.c.l.b16 %v43
  %v88 = vunpack.c.l.b16 %v44
  %v89 = vpack.c.b16 %v74, %v73
  %v90 = vpack.c.b16 %v76, %v75
  %v91 = vpack.c.b16 %v78, %v77
  %v92 = vpack.c.b16 %v80, %v79
  %v93 = vpack.c.b16 %v82, %v81
  %v94 = vpack.c.b16 %v84, %v83
  %v95 = vpack.c.b16 %v86, %v85
  %v96 = vpack.c.b16 %v88, %v87
  %105 = vmatpush.bf16.msra.mxu0 %v96
  %106 = vmatpush.bf16.msra.mxu0 %v95
  %107 = vmatpush.bf16.msra.mxu0 %v94
  %108 = vmatpush.bf16.msra.mxu0 %v93
  %109 = vmatpush.bf16.msra.mxu0 %v92
  %110 = vmatpush.bf16.msra.mxu0 %v91
  %111 = vmatpush.bf16.msra.mxu0 %v90
  %112 = vmatpush.bf16.msra.mxu0 %v89
  %113 = vmatmul.bf16.gmra.mxu0 %v53
  %v114 = vpop.f32.mrf.mxu0
  %v115 = vadd.f32 0.0, %v114
  %v116 = vpop.f32.mrf.mxu0
  %v117 = vadd.f32 0.0, %v116
  %118 = vmatmul.bf16.gmra.mxu0 %v54
  %v119 = vpop.f32.mrf.mxu0
  %v120 = vadd.f32 0.0, %v119
  %v121 = vpop.f32.mrf.mxu0
  %v122 = vadd.f32 0.0, %v121
  %123 = vdwg.mxu0
  %v124 = vadd.f32 %v21, %v115
  %v125 = vadd.f32 %v22, %v117
  %v126 = vadd.f32 %v23, %v120
  %v127 = vadd.f32 %v24, %v122
  %128 = vst [vmem:[#allocation2] sm:$0xff] %v124
  %129 = vst [vmem:[#allocation2 + $0x8] sm:$0xff] %v125
  %130 = vst [vmem:[#allocation2 + $0x10] sm:$0xff] %v126
  %131 = vst [vmem:[#allocation2 + $0x18] sm:$0xff] %v127
  // Predicated region
  $region14: #{forward.14} parent=0 // pred_check
    %p132 = pneg %p13
  $region15: #{forward.14} parent=0 // pred_check_branch
    %134 = sbr.rel (%p132) target = $region17
  $region16: #{forward.14} parent=0 // pred_region
    %v135 = vld [vmem:[#allocation2] sm:$0xff]
    %v136 = vld [vmem:[#allocation2 + $0x8] sm:$0xff]
    %v137 = vld [vmem:[#allocation2 + $0x10] sm:$0xff]
    %v138 = vld [vmem:[#allocation2 + $0x18] sm:$0xff]
    %v139 = vpack.c.bf16 %v135, %v135
    %v140 = vpack.c.bf16 %v136, %v136
    %v141 = vpack.c.bf16 %v137, %v137
    %v142 = vpack.c.bf16 %v138, %v138
    %143 = vst [vmem:[%s2] sm:$0xf] %v139
    %144 = vst [vmem:[%s2 + $0x4] sm:$0xf] %v140
    %145 = vst [vmem:[%s2 + $0x8] sm:$0xf] %v141
    %146 = vst [vmem:[%s2 + $0xc] sm:$0xf] %v142
    %v147 = vadd.f32 %v135, %v136
    %v148 = vadd.f32 %v147, %v137
    %v149 = vadd.f32 %v148, %v138
    %v150 = vrot.slane %v149, 4
    %v151 = vadd.f32 %v149, %v150
    %v152 = vrot.slane %v151, 2
    %v153 = vadd.f32 %v151, %v152
    %v154 = vrot.slane %v153, 1
    %v155 = vadd.f32 %v153, %v154
    %v156 = vmul.f32 %v135, %v135
    %v157 = vmul.f32 %v136, %v136
    %v158 = vmul.f32 %v137, %v137
    %v159 = vmul.f32 %v138, %v138
    %v160 = vadd.f32 %v156, %v157
    %v161 = vadd.f32 %v160, %v158
    %v162 = vadd.f32 %v161, %v159
    %v163 = vrot.slane %v162, 4
    %v164 = vadd.f32 %v162, %v163
    %v165 = vrot.slane %v164, 2
    %v166 = vadd.f32 %v164, %v165
    %v167 = vrot.slane %v166, 1
    %v168 = vadd.f32 %v166, %v167
    %v169 = vlaneseq
    %v170 = vshrl.u32 %v169, 7
    %vm171 = vcmp.eq.s32.totalorder %v170, 0
    %vm172 = vcmp.eq.s32.totalorder %v170, 1
    %v173 = vsel %vm172, %v168, 0.0
    %v174 = vsel %vm171, %v155, %v173
    %175 = vst [vmem:[%s3] sm:$0xff] %v174
  $region17: #{forward.14} parent=0 // pred_fallthru
    _
  // Predicated region
  $region18: #{forward.14} parent=0 // pred_check
    _
  $region19: #{forward.14} parent=0 // pred_check_branch
    %177 = sbr.rel (0) target = $region21
  $region20: #{forward.14} parent=0 // pred_region
    _
  $region21: #{forward.14} parent=0 // pred_fallthru
    _
  // Predicated region
  $region22: #{forward.14} parent=0 // pred_check
    _
  $region23: #{forward.14} parent=0 // pred_check_branch
    %179 = sbr.rel (0) target = $region25
  $region24: #{forward.14} parent=0 // pred_region
    _
  $region25: #{forward.14} parent=0 // pred_fallthru
    _
  // Predicated region
  $region26: #{forward.14} parent=0 // pred_check
    _
  $region27: #{forward.14} parent=0 // pred_check_branch
    %181 = sbr.rel (0) target = $region29
  $region28: #{forward.14} parent=0 // pred_region
    _
  $region29: #{forward.14} parent=0 // pred_fallthru
    _
  // Predicated region
  $region30: #{forward.14} parent=0 // pred_check
    _
  $region31: #{forward.14} parent=0 // pred_check_branch
    %183 = sbr.rel (0) target = $region33
  $region32: #{forward.14} parent=0 // pred_region
    _
  $region33: #{forward.14} parent=0 // pred_fallthru
    _

// kernel: forward.15
$region0: #{forward.15}
  #allocation0 [shape = 'u32[]', space=smem, size = 0x4, offset = 0x4, fixed_abs, tag = 'smem constant byte address 0x4 - core index']
  #allocation1 [shape = 'u32[72,128]{1,0:T(1,128)}', space=vmem, size = 0x9000, scoped, tag = 'internal scratch']
  %s0 = inlined_call_operand.vmem [shape: bf16[32,128], index: 0, kind: input, shape index: {}]
  %s1 = inlined_call_operand.vmem [shape: f32[1,128], index: 1, kind: input, shape index: {}]
  %s2 = inlined_call_operand.vmem [shape: f32[1,128], index: 2, kind: input, shape index: {}]
  %s3 = inlined_call_operand.vmem [shape: bf16[32,128], index: 3, kind: output, shape index: {}]
  %s4 = sld [smem:[#allocation0]]
  $region22: #{forward.15} parent=0
    _
  %s6 = ssub.s32 1, %s4
  %s7 = scalar_select 0, %s6, %s4
  // Predicated region
  $region2: #{forward.15} parent=0 // pred_check
    _
  $region3: #{forward.15} parent=0 // pred_check_branch
    %9 = sbr.rel (0) target = $region5
  $region4: #{forward.15} parent=0 // pred_region
    _
  $region5: #{forward.15} parent=0 // pred_fallthru
    _
  // Predicated region
  $region6: #{forward.15} parent=0 // pred_check
    _
  $region7: #{forward.15} parent=0 // pred_check_branch
    %11 = sbr.rel (0) target = $region9
  $region8: #{forward.15} parent=0 // pred_region
    _
  $region9: #{forward.15} parent=0 // pred_fallthru
    _
  // Predicated region
  $region10: #{forward.15} parent=0 // pred_check
    _
  $region11: #{forward.15} parent=0 // pred_check_branch
    %13 = sbr.rel (0) target = $region13
  $region12: #{forward.15} parent=0 // pred_region
    _
  $region13: #{forward.15} parent=0 // pred_fallthru
    _
  %v14 = vld [vmem:[%s0] sm:$0xf]
  %v15 = vld [vmem:[%s0 + $0x4] sm:$0xf]
  %v16 = vld [vmem:[%s0 + $0x8] sm:$0xf]
  %v17 = vld [vmem:[%s0 + $0xc] sm:$0xf]
  %v18 = vunpack.c.l.bf16 %v14
  %v19 = vunpack.c.l.bf16 %v15
  %v20 = vunpack.c.l.bf16 %v16
  %v21 = vunpack.c.l.bf16 %v17
  %v22 = vld [vmem:[%s1] sm:$0x1]
  %v24 = vperm.slane %v22, 0
  %v26 = vmul.f32 %v18, %v24
  %v27 = vmul.f32 %v19, %v24
  %v28 = vmul.f32 %v20, %v24
  %v29 = vmul.f32 %v21, %v24
  %v30 = vld [vmem:[%s2] sm:$0x1]
  %v32 = vperm.slane %v30, 0
  %v34 = vadd.f32 %v26, %v32
  %v35 = vadd.f32 %v27, %v32
  %v36 = vadd.f32 %v28, %v32
  %v37 = vadd.f32 %v29, %v32
  %vm38 = vcmp.ge.f32.partialorder %v34, 0.0
  %vm39 = vcmp.ge.f32.partialorder %v35, 0.0
  %vm40 = vcmp.ge.f32.partialorder %v36, 0.0
  %vm41 = vcmp.ge.f32.partialorder %v37, 0.0
  %v42 = vmul.f32 %v34, 0.2
  %v43 = vmul.f32 %v35, 0.2
  %v44 = vmul.f32 %v36, 0.2
  %v45 = vmul.f32 %v37, 0.2
  %v46 = vsel %vm38, %v34, %v42
  %v47 = vsel %vm39, %v35, %v43
  %v48 = vsel %vm40, %v36, %v44
  %v49 = vsel %vm41, %v37, %v45
  %v50 = vpack.c.bf16 %v46, %v46
  %v51 = vpack.c.bf16 %v47, %v47
  %v52 = vpack.c.bf16 %v48, %v48
  %v53 = vpack.c.bf16 %v49, %v49
  %54 = vst [vmem:[%s3] sm:$0xf] %v50
  %55 = vst [vmem:[%s3 + $0x4] sm:$0xf] %v51
  %56 = vst [vmem:[%s3 + $0x8] sm:$0xf] %v52
  %57 = vst [vmem:[%s3 + $0xc] sm:$0xf] %v53
  // Predicated region
  $region14: #{forward.15} parent=0 // pred_check
    _
  $region15: #{forward.15} parent=0 // pred_check_branch
    %59 = sbr.rel (0) target = $region17
  $region16: #{forward.15} parent=0 // pred_region
    _
  $region17: #{forward.15} parent=0 // pred_fallthru
    _
  // Predicated region
  $region18: #{forward.15} parent=0 // pred_check
    _
  $region19: #{forward.15} parent=0 // pred_check_branch
    %61 = sbr.rel (0) target = $region21
  $region20: #{forward.15} parent=0 // pred_region
    _
  $region21: #{forward.15} parent=0 // pred_fallthru
    _

// kernel: forward.16
$region0: #{forward.16}
  #allocation0 [shape = 'u32[]', space=smem, size = 0x4, offset = 0x4, fixed_abs, tag = 'smem constant byte address 0x4 - core index']
  #allocation1 [shape = 'u32[72,128]{1,0:T(1,128)}', space=vmem, size = 0x9000, scoped, tag = 'internal scratch']
  #allocation2 [shape = 'f32[16,128]{1,0:T(8,128)}', space=vmem, size = 0x2000, scoped, tag = 'scratch operand']
  %s0 = inlined_call_operand.vmem [shape: bf16[16,256], index: 0, kind: input, shape index: {}]
  %s1 = inlined_call_operand.vmem [shape: bf16[256,128], index: 1, kind: input, shape index: {}]
  %s2 = inlined_call_operand.vmem [shape: bf16[16,128], index: 2, kind: output, shape index: {}]
  %s3 = sld [smem:[#allocation0]]
  $region26: #{forward.16} parent=0
    _
  %s5 = ssub.s32 1, %s3
  %s6 = scalar_select 0, %s5, %s3
  // Predicated region
  $region2: #{forward.16} parent=0 // pred_check
    _
  $region3: #{forward.16} parent=0 // pred_check_branch
    %8 = sbr.rel (0) target = $region5
  $region4: #{forward.16} parent=0 // pred_region
    _
  $region5: #{forward.16} parent=0 // pred_fallthru
    _
  // Predicated region
  $region6: #{forward.16} parent=0 // pred_check
    _
  $region7: #{forward.16} parent=0 // pred_check_branch
    %10 = sbr.rel (0) target = $region9
  $region8: #{forward.16} parent=0 // pred_region
    _
  $region9: #{forward.16} parent=0 // pred_fallthru
    _
  %p11 = scmp.eq.s32.totalorder 0, 0
  // Predicated region
  $region10: #{forward.16} parent=0 // pred_check
    %p12 = pneg %p11
  $region11: #{forward.16} parent=0 // pred_check_branch
    %14 = sbr.rel (%p12) target = $region13
  $region12: #{forward.16} parent=0 // pred_region
    %15 = vst [vmem:[#allocation2] sm:$0xff] 0.0
    %16 = vst [vmem:[#allocation2 + $0x8] sm:$0xff] 0.0
  $region13: #{forward.16} parent=0 // pred_fallthru
    _
  %v17 = vld [vmem:[#allocation2] sm:$0xff]
  %v18 = vld [vmem:[#allocation2 + $0x8] sm:$0xff]
  %v19 = vld [vmem:[%s0] sm:$0xff]
  %v20 = vld [vmem:[%s0 + $0x8] sm:$0xff]
  %v21 = vld [vmem:[%s1] sm:$0xf]
  %v22 = vld [vmem:[%s1 + $0x4] sm:$0xf]
  %v23 = vld [vmem:[%s1 + $0x8] sm:$0xf]
  %v24 = vld [vmem:[%s1 + $0xc] sm:$0xf]
  %v25 = vld [vmem:[%s1 + $0x10] sm:$0xf]
  %v26 = vld [vmem:[%s1 + $0x14] sm:$0xf]
  %v27 = vld [vmem:[%s1 + $0x18] sm:$0xf]
  %v28 = vld [vmem:[%s1 + $0x1c] sm:$0xf]
  %v29 = vld [vmem:[%s1 + $0x20] sm:$0xf]
  %v30 = vld [vmem:[%s1 + $0x24] sm:$0xf]
  %v31 = vld [vmem:[%s1 + $0x28] sm:$0xf]
  %v32 = vld [vmem:[%s1 + $0x2c] sm:$0xf]
  %v33 = vld [vmem:[%s1 + $0x30] sm:$0xf]
  %v34 = vld [vmem:[%s1 + $0x34] sm:$0xf]
  %v35 = vld [vmem:[%s1 + $0x38] sm:$0xf]
  %v36 = vld [vmem:[%s1 + $0x3c] sm:$0xf]
  %v37 = vld [vmem:[%s1 + $0x40] sm:$0xf]
  %v38 = vld [vmem:[%s1 + $0x44] sm:$0xf]
  %v39 = vld [vmem:[%s1 + $0x48] sm:$0xf]
  %v40 = vld [vmem:[%s1 + $0x4c] sm:$0xf]
  %v41 = vld [vmem:[%s1 + $0x50] sm:$0xf]
  %v42 = vld [vmem:[%s1 + $0x54] sm:$0xf]
  %v43 = vld [vmem:[%s1 + $0x58] sm:$0xf]
  %v44 = vld [vmem:[%s1 + $0x5c] sm:$0xf]
  %v45 = vld [vmem:[%s1 + $0x60] sm:$0xf]
  %v46 = vld [vmem:[%s1 + $0x64] sm:$0xf]
  %v47 = vld [vmem:[%s1 + $0x68] sm:$0xf]
  %v48 = vld [vmem:[%s1 + $0x6c] sm:$0xf]
  %v49 = vld [vmem:[%s1 + $0x70] sm:$0xf]
  %v50 = vld [vmem:[%s1 + $0x74] sm:$0xf]
  %v51 = vld [vmem:[%s1 + $0x78] sm:$0xf]
  %v52 = vld [vmem:[%s1 + $0x7c] sm:$0xf]
  %v55 = vunpack.c.l.b16 %v19
  %v56 = vunpack.c.h.b16 %v19
  %v57 = vunpack.c.l.b16 %v20
  %v58 = vunpack.c.h.b16 %v20
  %v59 = vpack.c.b16 %v57, %v55
  %v60 = vpack.c.b16 %v58, %v56
  %v95 = vunpack.c.l.b16 %v21
  %v96 = vunpack.c.l.b16 %v22
  %v97 = vunpack.c.l.b16 %v23
  %v98 = vunpack.c.l.b16 %v24
  %v99 = vunpack.c.l.b16 %v25
  %v100 = vunpack.c.l.b16 %v26
  %v101 = vunpack.c.l.b16 %v27
  %v102 = vunpack.c.l.b16 %v28
  %v103 = vunpack.c.l.b16 %v29
  %v104 = vunpack.c.l.b16 %v30
  %v105 = vunpack.c.l.b16 %v31
  %v106 = vunpack.c.l.b16 %v32
  %v107 = vunpack.c.l.b16 %v33
  %v108 = vunpack.c.l.b16 %v34
  %v109 = vunpack.c.l.b16 %v35
  %v110 = vunpack.c.l.b16 %v36
  %v111 = vunpack.c.l.b16 %v37
  %v112 = vunpack.c.l.b16 %v38
  %v113 = vunpack.c.l.b16 %v39
  %v114 = vunpack.c.l.b16 %v40
  %v115 = vunpack.c.l.b16 %v41
  %v116 = vunpack.c.l.b16 %v42
  %v117 = vunpack.c.l.b16 %v43
  %v118 = vunpack.c.l.b16 %v44
  %v119 = vunpack.c.l.b16 %v45
  %v120 = vunpack.c.l.b16 %v46
  %v121 = vunpack.c.l.b16 %v47
  %v122 = vunpack.c.l.b16 %v48
  %v123 = vunpack.c.l.b16 %v49
  %v124 = vunpack.c.l.b16 %v50
  %v125 = vunpack.c.l.b16 %v51
  %v126 = vunpack.c.l.b16 %v52
  %v127 = vpack.c.b16 %v96, %v95
  %v128 = vpack.c.b16 %v98, %v97
  %v129 = vpack.c.b16 %v100, %v99
  %v130 = vpack.c.b16 %v102, %v101
  %v131 = vpack.c.b16 %v104, %v103
  %v132 = vpack.c.b16 %v106, %v105
  %v133 = vpack.c.b16 %v108, %v107
  %v134 = vpack.c.b16 %v110, %v109
  %v135 = vpack.c.b16 %v112, %v111
  %v136 = vpack.c.b16 %v114, %v113
  %v137 = vpack.c.b16 %v116, %v115
  %v138 = vpack.c.b16 %v118, %v117
  %v139 = vpack.c.b16 %v120, %v119
  %v140 = vpack.c.b16 %v122, %v121
  %v141 = vpack.c.b16 %v124, %v123
  %v142 = vpack.c.b16 %v126, %v125
  %159 = vmatpush.bf16.msra.mxu0 %v134
  %160 = vmatpush.bf16.msra.mxu0 %v133
  %161 = vmatpush.bf16.msra.mxu0 %v132
  %162 = vmatpush.bf16.msra.mxu0 %v131
  %163 = vmatpush.bf16.msra.mxu0 %v130
  %164 = vmatpush.bf16.msra.mxu0 %v129
  %165 = vmatpush.bf16.msra.mxu0 %v128
  %166 = vmatpush.bf16.msra.mxu0 %v127
  %167 = vmatmul.bf16.gmra.mxu0 %v59
  %v168 = vpop.f32.mrf.mxu0
  %v169 = vadd.f32 0.0, %v168
  %v170 = vpop.f32.mrf.mxu0
  %v171 = vadd.f32 0.0, %v170
  %172 = vdwg.mxu0
  %173 = vmatpush.bf16.msra.mxu0 %v142
  %174 = vmatpush.bf16.msra.mxu0 %v141
  %175 = vmatpush.bf16.msra.mxu0 %v140
  %176 = vmatpush.bf16.msra.mxu0 %v139
  %177 = vmatpush.bf16.msra.mxu0 %v138
  %178 = vmatpush.bf16.msra.mxu0 %v137
  %179 = vmatpush.bf16.msra.mxu0 %v136
  %180 = vmatpush.bf16.msra.mxu0 %v135
  %181 = vmatmul.bf16.gmra.mxu0 %v60
  %v182 = vpop.f32.mrf.mxu0
  %v183 = vadd.f32 %v169, %v182
  %v184 = vpop.f32.mrf.mxu0
  %v185 = vadd.f32 %v171, %v184
  %186 = vdwg.mxu0
  %v187 = vadd.f32 %v17, %v183
  %v188 = vadd.f32 %v18, %v185
  %189 = vst [vmem:[#allocation2] sm:$0xff] %v187
  %190 = vst [vmem:[#allocation2 + $0x8] sm:$0xff] %v188
  // Predicated region
  $region14: #{forward.16} parent=0 // pred_check
    %p191 = pneg %p11
  $region15: #{forward.16} parent=0 // pred_check_branch
    %193 = sbr.rel (%p191) target = $region17
  $region16: #{forward.16} parent=0 // pred_region
    %v194 = vld [vmem:[#allocation2] sm:$0xff]
    %v195 = vld [vmem:[#allocation2 + $0x8] sm:$0xff]
    %v196 = vpack.c.bf16 %v194, %v194
    %v197 = vpack.c.bf16 %v195, %v195
    %198 = vst [vmem:[%s2] sm:$0xf] %v196
    %199 = vst [vmem:[%s2 + $0x4] sm:$0xf] %v197
  $region17: #{forward.16} parent=0 // pred_fallthru
    _
  // Predicated region
  $region18: #{forward.16} parent=0 // pred_check
    _
  $region19: #{forward.16} parent=0 // pred_check_branch
    %201 = sbr.rel (0) target = $region21
  $region20: #{forward.16} parent=0 // pred_region
    _
  $region21: #{forward.16} parent=0 // pred_fallthru
    _
  // Predicated region
  $region22: #{forward.16} parent=0 // pred_check
    _
  $region23: #{forward.16} parent=0 // pred_check_branch
    %203 = sbr.rel (0) target = $region25
  $region24: #{forward.16} parent=0 // pred_region
    _
  $region25: #{forward.16} parent=0 // pred_fallthru
    _

// kernel: forward.18
$region0: #{forward.18}
  #allocation0 [shape = 'u32[]', space=smem, size = 0x4, offset = 0x4, fixed_abs, tag = 'smem constant byte address 0x4 - core index']
  #allocation1 [shape = 'u32[72,128]{1,0:T(1,128)}', space=vmem, size = 0x9000, scoped, tag = 'internal scratch']
  %s0 = inlined_call_operand.vmem [shape: bf16[32,128], index: 0, kind: input, shape index: {}]
  %s1 = inlined_call_operand.vmem [shape: f32[1,128], index: 1, kind: input, shape index: {}]
  %s2 = inlined_call_operand.vmem [shape: f32[1,128], index: 2, kind: input, shape index: {}]
  %s3 = inlined_call_operand.vmem [shape: bf16[32,128], index: 3, kind: output, shape index: {}]
  %s4 = sld [smem:[#allocation0]]
  $region22: #{forward.18} parent=0
    _
  %s6 = ssub.s32 1, %s4
  %s7 = scalar_select 0, %s6, %s4
  // Predicated region
  $region2: #{forward.18} parent=0 // pred_check
    _
  $region3: #{forward.18} parent=0 // pred_check_branch
    %9 = sbr.rel (0) target = $region5
  $region4: #{forward.18} parent=0 // pred_region
    _
  $region5: #{forward.18} parent=0 // pred_fallthru
    _
  // Predicated region
  $region6: #{forward.18} parent=0 // pred_check
    _
  $region7: #{forward.18} parent=0 // pred_check_branch
    %11 = sbr.rel (0) target = $region9
  $region8: #{forward.18} parent=0 // pred_region
    _
  $region9: #{forward.18} parent=0 // pred_fallthru
    _
  // Predicated region
  $region10: #{forward.18} parent=0 // pred_check
    _
  $region11: #{forward.18} parent=0 // pred_check_branch
    %13 = sbr.rel (0) target = $region13
  $region12: #{forward.18} parent=0 // pred_region
    _
  $region13: #{forward.18} parent=0 // pred_fallthru
    _
  %v14 = vld [vmem:[%s0] sm:$0xf]
  %v15 = vld [vmem:[%s0 + $0x4] sm:$0xf]
  %v16 = vld [vmem:[%s0 + $0x8] sm:$0xf]
  %v17 = vld [vmem:[%s0 + $0xc] sm:$0xf]
  %v18 = vunpack.c.l.bf16 %v14
  %v19 = vunpack.c.l.bf16 %v15
  %v20 = vunpack.c.l.bf16 %v16
  %v21 = vunpack.c.l.bf16 %v17
  %v22 = vld [vmem:[%s1] sm:$0x1]
  %v24 = vperm.slane %v22, 0
  %v26 = vmul.f32 %v18, %v24
  %v27 = vmul.f32 %v19, %v24
  %v28 = vmul.f32 %v20, %v24
  %v29 = vmul.f32 %v21, %v24
  %v30 = vld [vmem:[%s2] sm:$0x1]
  %v32 = vperm.slane %v30, 0
  %v34 = vadd.f32 %v26, %v32
  %v35 = vadd.f32 %v27, %v32
  %v36 = vadd.f32 %v28, %v32
  %v37 = vadd.f32 %v29, %v32
  %v38 = vpack.c.bf16 %v34, %v34
  %v39 = vpack.c.bf16 %v35, %v35
  %v40 = vpack.c.bf16 %v36, %v36
  %v41 = vpack.c.bf16 %v37, %v37
  %42 = vst [vmem:[%s3] sm:$0xf] %v38
  %43 = vst [vmem:[%s3 + $0x4] sm:$0xf] %v39
  %44 = vst [vmem:[%s3 + $0x8] sm:$0xf] %v40
  %45 = vst [vmem:[%s3 + $0xc] sm:$0xf] %v41
  // Predicated region
  $region14: #{forward.18} parent=0 // pred_check
    _
  $region15: #{forward.18} parent=0 // pred_check_branch
    %47 = sbr.rel (0) target = $region17
  $region16: #{forward.18} parent=0 // pred_region
    _
  $region17: #{forward.18} parent=0 // pred_fallthru
    _
  // Predicated region
  $region18: #{forward.18} parent=0 // pred_check
    _
  $region19: #{forward.18} parent=0 // pred_check_branch
    %49 = sbr.rel (0) target = $region21
  $region20: #{forward.18} parent=0 // pred_region
    _
  $region21: #{forward.18} parent=0 // pred_fallthru
    _

// kernel: forward.17
$region0: #{forward.17}
  #allocation0 [shape = 'u32[]', space=smem, size = 0x4, offset = 0x4, fixed_abs, tag = 'smem constant byte address 0x4 - core index']
  #allocation1 [shape = 'u32[72,128]{1,0:T(1,128)}', space=vmem, size = 0x9000, scoped, tag = 'internal scratch']
  #allocation2 [shape = 'f32[32,128]{1,0:T(8,128)}', space=vmem, size = 0x4000, scoped, tag = 'scratch operand']
  %s0 = inlined_call_operand.vmem [shape: bf16[32,512], index: 0, kind: input, shape index: {}]
  %s1 = inlined_call_operand.vmem [shape: bf16[512,128], index: 1, kind: input, shape index: {}]
  %s2 = inlined_call_operand.vmem [shape: bf16[32,128], index: 2, kind: output, shape index: {0}]
  %s3 = inlined_call_operand.vmem [shape: f32[8,128], index: 3, kind: output, shape index: {1}]
  %4 = xla_tuple %s2, %s3
  %s5 = sld [smem:[#allocation0]]
  $region34: #{forward.17} parent=0
    _
  %s7 = ssub.s32 1, %s5
  %s8 = scalar_select 0, %s7, %s5
  // Predicated region
  $region2: #{forward.17} parent=0 // pred_check
    _
  $region3: #{forward.17} parent=0 // pred_check_branch
    %10 = sbr.rel (0) target = $region5
  $region4: #{forward.17} parent=0 // pred_region
    _
  $region5: #{forward.17} parent=0 // pred_fallthru
    _
  // Predicated region
  $region6: #{forward.17} parent=0 // pred_check
    _
  $region7: #{forward.17} parent=0 // pred_check_branch
    %12 = sbr.rel (0) target = $region9
  $region8: #{forward.17} parent=0 // pred_region
    _
  $region9: #{forward.17} parent=0 // pred_fallthru
    _
  %p13 = scmp.eq.s32.totalorder 0, 0
  // Predicated region
  $region10: #{forward.17} parent=0 // pred_check
    %p14 = pneg %p13
  $region11: #{forward.17} parent=0 // pred_check_branch
    %16 = sbr.rel (%p14) target = $region13
  $region12: #{forward.17} parent=0 // pred_region
    %17 = vst [vmem:[#allocation2] sm:$0xff] 0.0
    %18 = vst [vmem:[#allocation2 + $0x8] sm:$0xff] 0.0
    %19 = vst [vmem:[#allocation2 + $0x10] sm:$0xff] 0.0
    %20 = vst [vmem:[#allocation2 + $0x18] sm:$0xff] 0.0
  $region13: #{forward.17} parent=0 // pred_fallthru
    _
  %v21 = vld [vmem:[#allocation2] sm:$0xff]
  %v22 = vld [vmem:[#allocation2 + $0x8] sm:$0xff]
  %v23 = vld [vmem:[#allocation2 + $0x10] sm:$0xff]
  %v24 = vld [vmem:[#allocation2 + $0x18] sm:$0xff]
  %v25 = vld [vmem:[%s0] sm:$0xff]
  %v26 = vld [vmem:[%s0 + $0x8] sm:$0xff]
  %v27 = vld [vmem:[%s0 + $0x10] sm:$0xff]
  %v28 = vld [vmem:[%s0 + $0x18] sm:$0xff]
  %v29 = vld [vmem:[%s0 + $0x20] sm:$0xff]
  %v30 = vld [vmem:[%s0 + $0x28] sm:$0xff]
  %v31 = vld [vmem:[%s0 + $0x30] sm:$0xff]
  %v32 = vld [vmem:[%s0 + $0x38] sm:$0xff]
  %v33 = vld [vmem:[%s1] sm:$0xf]
  %v34 = vld [vmem:[%s1 + $0x4] sm:$0xf]
  %v35 = vld [vmem:[%s1 + $0x8] sm:$0xf]
  %v36 = vld [vmem:[%s1 + $0xc] sm:$0xf]
  %v37 = vld [vmem:[%s1 + $0x10] sm:$0xf]
  %v38 = vld [vmem:[%s1 + $0x14] sm:$0xf]
  %v39 = vld [vmem:[%s1 + $0x18] sm:$0xf]
  %v40 = vld [vmem:[%s1 + $0x1c] sm:$0xf]
  %v41 = vld [vmem:[%s1 + $0x20] sm:$0xf]
  %v42 = vld [vmem:[%s1 + $0x24] sm:$0xf]
  %v43 = vld [vmem:[%s1 + $0x28] sm:$0xf]
  %v44 = vld [vmem:[%s1 + $0x2c] sm:$0xf]
  %v45 = vld [vmem:[%s1 + $0x30] sm:$0xf]
  %v46 = vld [vmem:[%s1 + $0x34] sm:$0xf]
  %v47 = vld [vmem:[%s1 + $0x38] sm:$0xf]
  %v48 = vld [vmem:[%s1 + $0x3c] sm:$0xf]
  %v49 = vld [vmem:[%s1 + $0x40] sm:$0xf]
  %v50 = vld [vmem:[%s1 + $0x44] sm:$0xf]
  %v51 = vld [vmem:[%s1 + $0x48] sm:$0xf]
  %v52 = vld [vmem:[%s1 + $0x4c] sm:$0xf]
  %v53 = vld [vmem:[%s1 + $0x50] sm:$0xf]
  %v54 = vld [vmem:[%s1 + $0x54] sm:$0xf]
  %v55 = vld [vmem:[%s1 + $0x58] sm:$0xf]
  %v56 = vld [vmem:[%s1 + $0x5c] sm:$0xf]
  %v57 = vld [vmem:[%s1 + $0x60] sm:$0xf]
  %v58 = vld [vmem:[%s1 + $0x64] sm:$0xf]
  %v59 = vld [vmem:[%s1 + $0x68] sm:$0xf]
  %v60 = vld [vmem:[%s1 + $0x6c] sm:$0xf]
  %v61 = vld [vmem:[%s1 + $0x70] sm:$0xf]
  %v62 = vld [vmem:[%s1 + $0x74] sm:$0xf]
  %v63 = vld [vmem:[%s1 + $0x78] sm:$0xf]
  %v64 = vld [vmem:[%s1 + $0x7c] sm:$0xf]
  %v65 = vld [vmem:[%s1 + $0x80] sm:$0xf]
  %v66 = vld [vmem:[%s1 + $0x84] sm:$0xf]
  %v67 = vld [vmem:[%s1 + $0x88] sm:$0xf]
  %v68 = vld [vmem:[%s1 + $0x8c] sm:$0xf]
  %v69 = vld [vmem:[%s1 + $0x90] sm:$0xf]
  %v70 = vld [vmem:[%s1 + $0x94] sm:$0xf]
  %v71 = vld [vmem:[%s1 + $0x98] sm:$0xf]
  %v72 = vld [vmem:[%s1 + $0x9c] sm:$0xf]
  %v73 = vld [vmem:[%s1 + $0xa0] sm:$0xf]
  %v74 = vld [vmem:[%s1 + $0xa4] sm:$0xf]
  %v75 = vld [vmem:[%s1 + $0xa8] sm:$0xf]
  %v76 = vld [vmem:[%s1 + $0xac] sm:$0xf]
  %v77 = vld [vmem:[%s1 + $0xb0] sm:$0xf]
  %v78 = vld [vmem:[%s1 + $0xb4] sm:$0xf]
  %v79 = vld [vmem:[%s1 + $0xb8] sm:$0xf]
  %v80 = vld [vmem:[%s1 + $0xbc] sm:$0xf]
  %v81 = vld [vmem:[%s1 + $0xc0] sm:$0xf]
  %v82 = vld [vmem:[%s1 + $0xc4] sm:$0xf]
  %v83 = vld [vmem:[%s1 + $0xc8] sm:$0xf]
  %v84 = vld [vmem:[%s1 + $0xcc] sm:$0xf]
  %v85 = vld [vmem:[%s1 + $0xd0] sm:$0xf]
  %v86 = vld [vmem:[%s1 + $0xd4] sm:$0xf]
  %v87 = vld [vmem:[%s1 + $0xd8] sm:$0xf]
  %v88 = vld [vmem:[%s1 + $0xdc] sm:$0xf]
  %v89 = vld [vmem:[%s1 + $0xe0] sm:$0xf]
  %v90 = vld [vmem:[%s1 + $0xe4] sm:$0xf]
  %v91 = vld [vmem:[%s1 + $0xe8] sm:$0xf]
  %v92 = vld [vmem:[%s1 + $0xec] sm:$0xf]
  %v93 = vld [vmem:[%s1 + $0xf0] sm:$0xf]
  %v94 = vld [vmem:[%s1 + $0xf4] sm:$0xf]
  %v95 = vld [vmem:[%s1 + $0xf8] sm:$0xf]
  %v96 = vld [vmem:[%s1 + $0xfc] sm:$0xf]
  %v105 = vunpack.c.l.b16 %v25
  %v106 = vunpack.c.h.b16 %v25
  %v107 = vunpack.c.l.b16 %v26
  %v108 = vunpack.c.h.b16 %v26
  %v109 = vunpack.c.l.b16 %v27
  %v110 = vunpack.c.h.b16 %v27
  %v111 = vunpack.c.l.b16 %v28
  %v112 = vunpack.c.h.b16 %v28
  %v113 = vunpack.c.l.b16 %v29
  %v114 = vunpack.c.h.b16 %v29
  %v115 = vunpack.c.l.b16 %v30
  %v116 = vunpack.c.h.b16 %v30
  %v117 = vunpack.c.l.b16 %v31
  %v118 = vunpack.c.h.b16 %v31
  %v119 = vunpack.c.l.b16 %v32
  %v120 = vunpack.c.h.b16 %v32
  %v121 = vpack.c.b16 %v109, %v105
  %v122 = vpack.c.b16 %v110, %v106
  %v123 = vpack.c.b16 %v111, %v107
  %v124 = vpack.c.b16 %v112, %v108
  %v125 = vpack.c.b16 %v117, %v113
  %v126 = vpack.c.b16 %v118, %v114
  %v127 = vpack.c.b16 %v119, %v115
  %v128 = vpack.c.b16 %v120, %v116
  %v201 = vunpack.c.l.b16 %v33
  %v202 = vunpack.c.l.b16 %v34
  %v203 = vunpack.c.l.b16 %v35
  %v204 = vunpack.c.l.b16 %v36
  %v205 = vunpack.c.l.b16 %v37
  %v206 = vunpack.c.l.b16 %v38
  %v207 = vunpack.c.l.b16 %v39
  %v208 = vunpack.c.l.b16 %v40
  %v209 = vunpack.c.l.b16 %v41
  %v210 = vunpack.c.l.b16 %v42
  %v211 = vunpack.c.l.b16 %v43
  %v212 = vunpack.c.l.b16 %v44
  %v213 = vunpack.c.l.b16 %v45
  %v214 = vunpack.c.l.b16 %v46
  %v215 = vunpack.c.l.b16 %v47
  %v216 = vunpack.c.l.b16 %v48
  %v217 = vunpack.c.l.b16 %v49
  %v218 = vunpack.c.l.b16 %v50
  %v219 = vunpack.c.l.b16 %v51
  %v220 = vunpack.c.l.b16 %v52
  %v221 = vunpack.c.l.b16 %v53
  %v222 = vunpack.c.l.b16 %v54
  %v223 = vunpack.c.l.b16 %v55
  %v224 = vunpack.c.l.b16 %v56
  %v225 = vunpack.c.l.b16 %v57
  %v226 = vunpack.c.l.b16 %v58
  %v227 = vunpack.c.l.b16 %v59
  %v228 = vunpack.c.l.b16 %v60
  %v229 = vunpack.c.l.b16 %v61
  %v230 = vunpack.c.l.b16 %v62
  %v231 = vunpack.c.l.b16 %v63
  %v232 = vunpack.c.l.b16 %v64
  %v233 = vunpack.c.l.b16 %v65
  %v234 = vunpack.c.l.b16 %v66
  %v235 = vunpack.c.l.b16 %v67
  %v236 = vunpack.c.l.b16 %v68
  %v237 = vunpack.c.l.b16 %v69
  %v238 = vunpack.c.l.b16 %v70
  %v239 = vunpack.c.l.b16 %v71
  %v240 = vunpack.c.l.b16 %v72
  %v241 = vunpack.c.l.b16 %v73
  %v242 = vunpack.c.l.b16 %v74
  %v243 = vunpack.c.l.b16 %v75
  %v244 = vunpack.c.l.b16 %v76
  %v245 = vunpack.c.l.b16 %v77
  %v246 = vunpack.c.l.b16 %v78
  %v247 = vunpack.c.l.b16 %v79
  %v248 = vunpack.c.l.b16 %v80
  %v249 = vunpack.c.l.b16 %v81
  %v250 = vunpack.c.l.b16 %v82
  %v251 = vunpack.c.l.b16 %v83
  %v252 = vunpack.c.l.b16 %v84
  %v253 = vunpack.c.l.b16 %v85
  %v254 = vunpack.c.l.b16 %v86
  %v255 = vunpack.c.l.b16 %v87
  %v256 = vunpack.c.l.b16 %v88
  %v257 = vunpack.c.l.b16 %v89
  %v258 = vunpack.c.l.b16 %v90
  %v259 = vunpack.c.l.b16 %v91
  %v260 = vunpack.c.l.b16 %v92
  %v261 = vunpack.c.l.b16 %v93
  %v262 = vunpack.c.l.b16 %v94
  %v263 = vunpack.c.l.b16 %v95
  %v264 = vunpack.c.l.b16 %v96
  %v265 = vpack.c.b16 %v202, %v201
  %v266 = vpack.c.b16 %v204, %v203
  %v267 = vpack.c.b16 %v206, %v205
  %v268 = vpack.c.b16 %v208, %v207
  %v269 = vpack.c.b16 %v210, %v209
  %v270 = vpack.c.b16 %v212, %v211
  %v271 = vpack.c.b16 %v214, %v213
  %v272 = vpack.c.b16 %v216, %v215
  %v273 = vpack.c.b16 %v218, %v217
  %v274 = vpack.c.b16 %v220, %v219
  %v275 = vpack.c.b16 %v222, %v221
  %v276 = vpack.c.b16 %v224, %v223
  %v277 = vpack.c.b16 %v226, %v225
  %v278 = vpack.c.b16 %v228, %v227
  %v279 = vpack.c.b16 %v230, %v229
  %v280 = vpack.c.b16 %v232, %v231
  %v281 = vpack.c.b16 %v234, %v233
  %v282 = vpack.c.b16 %v236, %v235
  %v283 = vpack.c.b16 %v238, %v237
  %v284 = vpack.c.b16 %v240, %v239
  %v285 = vpack.c.b16 %v242, %v241
  %v286 = vpack.c.b16 %v244, %v243
  %v287 = vpack.c.b16 %v246, %v245
  %v288 = vpack.c.b16 %v248, %v247
  %v289 = vpack.c.b16 %v250, %v249
  %v290 = vpack.c.b16 %v252, %v251
  %v291 = vpack.c.b16 %v254, %v253
  %v292 = vpack.c.b16 %v256, %v255
  %v293 = vpack.c.b16 %v258, %v257
  %v294 = vpack.c.b16 %v260, %v259
  %v295 = vpack.c.b16 %v262, %v261
  %v296 = vpack.c.b16 %v264, %v263
  %329 = vmatpush.bf16.msra.mxu0 %v272
  %330 = vmatpush.bf16.msra.mxu0 %v271
  %331 = vmatpush.bf16.msra.mxu0 %v270
  %332 = vmatpush.bf16.msra.mxu0 %v269
  %333 = vmatpush.bf16.msra.mxu0 %v268
  %334 = vmatpush.bf16.msra.mxu0 %v267
  %335 = vmatpush.bf16.msra.mxu0 %v266
  %336 = vmatpush.bf16.msra.mxu0 %v265
  %337 = vmatmul.bf16.gmra.mxu0 %v121
  %v338 = vpop.f32.mrf.mxu0
  %v339 = vadd.f32 0.0, %v338
  %v340 = vpop.f32.mrf.mxu0
  %v341 = vadd.f32 0.0, %v340
  %342 = vmatmul.bf16.gmra.mxu0 %v125
  %v343 = vpop.f32.mrf.mxu0
  %v344 = vadd.f32 0.0, %v343
  %v345 = vpop.f32.mrf.mxu0
  %v346 = vadd.f32 0.0, %v345
  %347 = vdwg.mxu0
  %348 = vmatpush.bf16.msra.mxu0 %v280
  %349 = vmatpush.bf16.msra.mxu0 %v279
  %350 = vmatpush.bf16.msra.mxu0 %v278
  %351 = vmatpush.bf16.msra.mxu0 %v277
  %352 = vmatpush.bf16.msra.mxu0 %v276
  %353 = vmatpush.bf16.msra.mxu0 %v275
  %354 = vmatpush.bf16.msra.mxu0 %v274
  %355 = vmatpush.bf16.msra.mxu0 %v273
  %356 = vmatmul.bf16.gmra.mxu0 %v122
  %v357 = vpop.f32.mrf.mxu0
  %v358 = vadd.f32 %v339, %v357
  %v359 = vpop.f32.mrf.mxu0
  %v360 = vadd.f32 %v341, %v359
  %361 = vmatmul.bf16.gmra.mxu0 %v126
  %v362 = vpop.f32.mrf.mxu0
  %v363 = vadd.f32 %v344, %v362
  %v364 = vpop.f32.mrf.mxu0
  %v365 = vadd.f32 %v346, %v364
  %366 = vdwg.mxu0
  %367 = vmatpush.bf16.msra.mxu0 %v288
  %368 = vmatpush.bf16.msra.mxu0 %v287
  %369 = vmatpush.bf16.msra.mxu0 %v286
  %370 = vmatpush.bf16.msra.mxu0 %v285
  %371 = vmatpush.bf16.msra.mxu0 %v284
  %372 = vmatpush.bf16.msra.mxu0 %v283
  %373 = vmatpush.bf16.msra.mxu0 %v282
  %374 = vmatpush.bf16.msra.mxu0 %v281
  %375 = vmatmul.bf16.gmra.mxu0 %v123
  %v376 = vpop.f32.mrf.mxu0
  %v377 = vadd.f32 %v358, %v376
  %v378 = vpop.f32.mrf.mxu0
  %v379 = vadd.f32 %v360, %v378
  %380 = vmatmul.bf16.gmra.mxu0 %v127
  %v381 = vpop.f32.mrf.mxu0
  %v382 = vadd.f32 %v363, %v381
  %v383 = vpop.f32.mrf.mxu0
  %v384 = vadd.f32 %v365, %v383
  %385 = vdwg.mxu0
  %386 = vmatpush.bf16.msra.mxu0 %v296
  %387 = vmatpush.bf16.msra.mxu0 %v295
  %388 = vmatpush.bf16.msra.mxu0 %v294
  %389 = vmatpush.bf16.msra.mxu0 %v293
  %390 = vmatpush.bf16.msra.mxu0 %v292
  %391 = vmatpush.bf16.msra.mxu0 %v291
  %392 = vmatpush.bf16.msra.mxu0 %v290
  %393 = vmatpush.bf16.msra.mxu0 %v289
  %394 = vmatmul.bf16.gmra.mxu0 %v124
  %v395 = vpop.f32.mrf.mxu0
  %v396 = vadd.f32 %v377, %v395
  %v397 = vpop.f32.mrf.mxu0
  %v398 = vadd.f32 %v379, %v397
  %399 = vmatmul.bf16.gmra.mxu0 %v128
  %v400 = vpop.f32.mrf.mxu0
  %v401 = vadd.f32 %v382, %v400
  %v402 = vpop.f32.mrf.mxu0
  %v403 = vadd.f32 %v384, %v402
  %404 = vdwg.mxu0
  %v405 = vadd.f32 %v21, %v396
  %v406 = vadd.f32 %v22, %v398
  %v407 = vadd.f32 %v23, %v401
  %v408 = vadd.f32 %v24, %v403
  %409 = vst [vmem:[#allocation2] sm:$0xff] %v405
  %410 = vst [vmem:[#allocation2 + $0x8] sm:$0xff] %v406
  %411 = vst [vmem:[#allocation2 + $0x10] sm:$0xff] %v407
  %412 = vst [vmem:[#allocation2 + $0x18] sm:$0xff] %v408
  // Predicated region
  $region14: #{forward.17} parent=0 // pred_check
    %p413 = pneg %p13
  $region15: #{forward.17} parent=0 // pred_check_branch
    %415 = sbr.rel (%p413) target = $region17
  $region16: #{forward.17} parent=0 // pred_region
    %v416 = vld [vmem:[#allocation2] sm:$0xff]
    %v417 = vld [vmem:[#allocation2 + $0x8] sm:$0xff]
    %v418 = vld [vmem:[#allocation2 + $0x10] sm:$0xff]
    %v419 = vld [vmem:[#allocation2 + $0x18] sm:$0xff]
    %v420 = vpack.c.bf16 %v416, %v416
    %v421 = vpack.c.bf16 %v417, %v417
    %v422 = vpack.c.bf16 %v418, %v418
    %v423 = vpack.c.bf16 %v419, %v419
    %424 = vst [vmem:[%s2] sm:$0xf] %v420
    %425 = vst [vmem:[%s2 + $0x4] sm:$0xf] %v421
    %426 = vst [vmem:[%s2 + $0x8] sm:$0xf] %v422
    %427 = vst [vmem:[%s2 + $0xc] sm:$0xf] %v423
    %v428 = vadd.f32 %v416, %v417
    %v429 = vadd.f32 %v428, %v418
    %v430 = vadd.f32 %v429, %v419
    %v431 = vrot.slane %v430, 4
    %v432 = vadd.f32 %v430, %v431
    %v433 = vrot.slane %v432, 2
    %v434 = vadd.f32 %v432, %v433
    %v435 = vrot.slane %v434, 1
    %v436 = vadd.f32 %v434, %v435
    %v437 = vmul.f32 %v416, %v416
    %v438 = vmul.f32 %v417, %v417
    %v439 = vmul.f32 %v418, %v418
    %v440 = vmul.f32 %v419, %v419
    %v441 = vadd.f32 %v437, %v438
    %v442 = vadd.f32 %v441, %v439
    %v443 = vadd.f32 %v442, %v440
    %v444 = vrot.slane %v443, 4
    %v445 = vadd.f32 %v443, %v444
    %v446 = vrot.slane %v445, 2
    %v447 = vadd.f32 %v445, %v446
    %v448 = vrot.slane %v447, 1
    %v449 = vadd.f32 %v447, %v448
    %v450 = vlaneseq
    %v451 = vshrl.u32 %v450, 7
    %vm452 = vcmp.eq.s32.totalorder %v451, 0
    %vm453 = vcmp.eq.s32.totalorder %v451, 1
    %v454 = vsel %vm453, %v449, 0.0
    %v455 = vsel %vm452, %v436, %v454
    %456 = vst [vmem:[%s3] sm:$0xff] %v455
  $region17: #{forward.17} parent=0 // pred_fallthru
    _
  // Predicated region
  $region18: #{forward.17} parent=0 // pred_check
    _
  $region19: #{forward.17} parent=0 // pred_check_branch
    %458 = sbr.rel (0) target = $region21
  $region20: #{forward.17} parent=0 // pred_region
    _
  $region21: #{forward.17} parent=0 // pred_fallthru
    _
  // Predicated region
  $region22: #{forward.17} parent=0 // pred_check
    _
  $region23: #{forward.17} parent=0 // pred_check_branch
    %460 = sbr.rel (0) target = $region25
  $region24: #{forward.17} parent=0 // pred_region
    _
  $region25: #{forward.17} parent=0 // pred_fallthru
    _
  // Predicated region
  $region26: #{forward.17} parent=0 // pred_check
    _
  $region27: #{forward.17} parent=0 // pred_check_branch
    %462 = sbr.rel (0) target = $region29
  $region28: #{forward.17} parent=0 // pred_region
    _
  $region29: #{forward.17} parent=0 // pred_fallthru
    _
  // Predicated region
  $region30: #{forward.17} parent=0 // pred_check
    _
  $region31: #{forward.17} parent=0 // pred_check_branch
    %464 = sbr.rel (0) target = $region33
  $region32: #{forward.17} parent=0 // pred_region
    _
  $region33: #{forward.17} parent=0 // pred_fallthru
    _

// kernel: forward.19
$region0: #{forward.19}
  #allocation0 [shape = 'u32[]', space=smem, size = 0x4, offset = 0x4, fixed_abs, tag = 'smem constant byte address 0x4 - core index']
  #allocation1 [shape = 'u32[72,128]{1,0:T(1,128)}', space=vmem, size = 0x9000, scoped, tag = 'internal scratch']
  #allocation2 [shape = 'f32[64,128]{1,0:T(8,128)}', space=vmem, size = 0x8000, scoped, tag = 'scratch operand']
  %s0 = inlined_call_operand.vmem [shape: bf16[64,128], index: 0, kind: input, shape index: {}]
  %s1 = inlined_call_operand.vmem [shape: bf16[128,128], index: 1, kind: input, shape index: {}]
  %s2 = inlined_call_operand.vmem [shape: bf16[64,128], index: 2, kind: output, shape index: {}]
  %s3 = sld [smem:[#allocation0]]
  $region26: #{forward.19} parent=0
    _
  %s5 = ssub.s32 1, %s3
  %s6 = scalar_select 0, %s5, %s3
  // Predicated region
  $region2: #{forward.19} parent=0 // pred_check
    _
  $region3: #{forward.19} parent=0 // pred_check_branch
    %8 = sbr.rel (0) target = $region5
  $region4: #{forward.19} parent=0 // pred_region
    _
  $region5: #{forward.19} parent=0 // pred_fallthru
    _
  // Predicated region
  $region6: #{forward.19} parent=0 // pred_check
    _
  $region7: #{forward.19} parent=0 // pred_check_branch
    %10 = sbr.rel (0) target = $region9
  $region8: #{forward.19} parent=0 // pred_region
    _
  $region9: #{forward.19} parent=0 // pred_fallthru
    _
  %p11 = scmp.eq.s32.totalorder 0, 0
  // Predicated region
  $region10: #{forward.19} parent=0 // pred_check
    %p12 = pneg %p11
  $region11: #{forward.19} parent=0 // pred_check_branch
    %14 = sbr.rel (%p12) target = $region13
  $region12: #{forward.19} parent=0 // pred_region
    %15 = vst [vmem:[#allocation2] sm:$0xff] 0.0
    %16 = vst [vmem:[#allocation2 + $0x8] sm:$0xff] 0.0
    %17 = vst [vmem:[#allocation2 + $0x10] sm:$0xff] 0.0
    %18 = vst [vmem:[#allocation2 + $0x18] sm:$0xff] 0.0
    %19 = vst [vmem:[#allocation2 + $0x20] sm:$0xff] 0.0
    %20 = vst [vmem:[#allocation2 + $0x28] sm:$0xff] 0.0
    %21 = vst [vmem:[#allocation2 + $0x30] sm:$0xff] 0.0
    %22 = vst [vmem:[#allocation2 + $0x38] sm:$0xff] 0.0
  $region13: #{forward.19} parent=0 // pred_fallthru
    _
  %v23 = vld [vmem:[#allocation2] sm:$0xff]
  %v24 = vld [vmem:[#allocation2 + $0x8] sm:$0xff]
  %v25 = vld [vmem:[#allocation2 + $0x10] sm:$0xff]
  %v26 = vld [vmem:[#allocation2 + $0x18] sm:$0xff]
  %v27 = vld [vmem:[#allocation2 + $0x20] sm:$0xff]
  %v28 = vld [vmem:[#allocation2 + $0x28] sm:$0xff]
  %v29 = vld [vmem:[#allocation2 + $0x30] sm:$0xff]
  %v30 = vld [vmem:[#allocation2 + $0x38] sm:$0xff]
  %v31 = vld [vmem:[%s0] sm:$0xf]
  %v32 = vld [vmem:[%s0 + $0x4] sm:$0xf]
  %v33 = vld [vmem:[%s0 + $0x8] sm:$0xf]
  %v34 = vld [vmem:[%s0 + $0xc] sm:$0xf]
  %v35 = vld [vmem:[%s0 + $0x10] sm:$0xf]
  %v36 = vld [vmem:[%s0 + $0x14] sm:$0xf]
  %v37 = vld [vmem:[%s0 + $0x18] sm:$0xf]
  %v38 = vld [vmem:[%s0 + $0x1c] sm:$0xf]
  %v39 = vld [vmem:[%s1] sm:$0xf]
  %v40 = vld [vmem:[%s1 + $0x4] sm:$0xf]
  %v41 = vld [vmem:[%s1 + $0x8] sm:$0xf]
  %v42 = vld [vmem:[%s1 + $0xc] sm:$0xf]
  %v43 = vld [vmem:[%s1 + $0x10] sm:$0xf]
  %v44 = vld [vmem:[%s1 + $0x14] sm:$0xf]
  %v45 = vld [vmem:[%s1 + $0x18] sm:$0xf]
  %v46 = vld [vmem:[%s1 + $0x1c] sm:$0xf]
  %v47 = vld [vmem:[%s1 + $0x20] sm:$0xf]
  %v48 = vld [vmem:[%s1 + $0x24] sm:$0xf]
  %v49 = vld [vmem:[%s1 + $0x28] sm:$0xf]
  %v50 = vld [vmem:[%s1 + $0x2c] sm:$0xf]
  %v51 = vld [vmem:[%s1 + $0x30] sm:$0xf]
  %v52 = vld [vmem:[%s1 + $0x34] sm:$0xf]
  %v53 = vld [vmem:[%s1 + $0x38] sm:$0xf]
  %v54 = vld [vmem:[%s1 + $0x3c] sm:$0xf]
  %v63 = vunpack.c.l.b16 %v31
  %v64 = vunpack.c.l.b16 %v32
  %v65 = vunpack.c.l.b16 %v33
  %v66 = vunpack.c.l.b16 %v34
  %v67 = vunpack.c.l.b16 %v35
  %v68 = vunpack.c.l.b16 %v36
  %v69 = vunpack.c.l.b16 %v37
  %v70 = vunpack.c.l.b16 %v38
  %v71 = vpack.c.b16 %v64, %v63
  %v72 = vpack.c.b16 %v66, %v65
  %v73 = vpack.c.b16 %v68, %v67
  %v74 = vpack.c.b16 %v70, %v69
  %v95 = vunpack.c.l.b16 %v39
  %v96 = vunpack.c.l.b16 %v40
  %v97 = vunpack.c.l.b16 %v41
  %v98 = vunpack.c.l.b16 %v42
  %v99 = vunpack.c.l.b16 %v43
  %v100 = vunpack.c.l.b16 %v44
  %v101 = vunpack.c.l.b16 %v45
  %v102 = vunpack.c.l.b16 %v46
  %v103 = vunpack.c.l.b16 %v47
  %v104 = vunpack.c.l.b16 %v48
  %v105 = vunpack.c.l.b16 %v49
  %v106 = vunpack.c.l.b16 %v50
  %v107 = vunpack.c.l.b16 %v51
  %v108 = vunpack.c.l.b16 %v52
  %v109 = vunpack.c.l.b16 %v53
  %v110 = vunpack.c.l.b16 %v54
  %v111 = vpack.c.b16 %v96, %v95
  %v112 = vpack.c.b16 %v98, %v97
  %v113 = vpack.c.b16 %v100, %v99
  %v114 = vpack.c.b16 %v102, %v101
  %v115 = vpack.c.b16 %v104, %v103
  %v116 = vpack.c.b16 %v106, %v105
  %v117 = vpack.c.b16 %v108, %v107
  %v118 = vpack.c.b16 %v110, %v109
  %127 = vmatpush.bf16.msra.mxu0 %v118
  %128 = vmatpush.bf16.msra.mxu0 %v117
  %129 = vmatpush.bf16.msra.mxu0 %v116
  %130 = vmatpush.bf16.msra.mxu0 %v115
  %131 = vmatpush.bf16.msra.mxu0 %v114
  %132 = vmatpush.bf16.msra.mxu0 %v113
  %133 = vmatpush.bf16.msra.mxu0 %v112
  %134 = vmatpush.bf16.msra.mxu0 %v111
  %135 = vmatmul.bf16.gmra.mxu0 %v71
  %v136 = vpop.f32.mrf.mxu0
  %v137 = vadd.f32 0.0, %v136
  %v138 = vpop.f32.mrf.mxu0
  %v139 = vadd.f32 0.0, %v138
  %140 = vmatmul.bf16.gmra.mxu0 %v72
  %v141 = vpop.f32.mrf.mxu0
  %v142 = vadd.f32 0.0, %v141
  %v143 = vpop.f32.mrf.mxu0
  %v144 = vadd.f32 0.0, %v143
  %145 = vmatmul.bf16.gmra.mxu0 %v73
  %v146 = vpop.f32.mrf.mxu0
  %v147 = vadd.f32 0.0, %v146
  %v148 = vpop.f32.mrf.mxu0
  %v149 = vadd.f32 0.0, %v148
  %150 = vmatmul.bf16.gmra.mxu0 %v74
  %v151 = vpop.f32.mrf.mxu0
  %v152 = vadd.f32 0.0, %v151
  %v153 = vpop.f32.mrf.mxu0
  %v154 = vadd.f32 0.0, %v153
  %155 = vdwg.mxu0
  %v156 = vadd.f32 %v23, %v137
  %v157 = vadd.f32 %v24, %v139
  %v158 = vadd.f32 %v25, %v142
  %v159 = vadd.f32 %v26, %v144
  %v160 = vadd.f32 %v27, %v147
  %v161 = vadd.f32 %v28, %v149
  %v162 = vadd.f32 %v29, %v152
  %v163 = vadd.f32 %v30, %v154
  %164 = vst [vmem:[#allocation2] sm:$0xff] %v156
  %165 = vst [vmem:[#allocation2 + $0x8] sm:$0xff] %v157
  %166 = vst [vmem:[#allocation2 + $0x10] sm:$0xff] %v158
  %167 = vst [vmem:[#allocation2 + $0x18] sm:$0xff] %v159
  %168 = vst [vmem:[#allocation2 + $0x20] sm:$0xff] %v160
  %169 = vst [vmem:[#allocation2 + $0x28] sm:$0xff] %v161
  %170 = vst [vmem:[#allocation2 + $0x30] sm:$0xff] %v162
  %171 = vst [vmem:[#allocation2 + $0x38] sm:$0xff] %v163
  // Predicated region
  $region14: #{forward.19} parent=0 // pred_check
    %p172 = pneg %p11
  $region15: #{forward.19} parent=0 // pred_check_branch
    %174 = sbr.rel (%p172) target = $region17
  $region16: #{forward.19} parent=0 // pred_region
    %v175 = vld [vmem:[#allocation2] sm:$0xff]
    %v176 = vld [vmem:[#allocation2 + $0x8] sm:$0xff]
    %v177 = vld [vmem:[#allocation2 + $0x10] sm:$0xff]
    %v178 = vld [vmem:[#allocation2 + $0x18] sm:$0xff]
    %v179 = vld [vmem:[#allocation2 + $0x20] sm:$0xff]
    %v180 = vld [vmem:[#allocation2 + $0x28] sm:$0xff]
    %v181 = vld [vmem:[#allocation2 + $0x30] sm:$0xff]
    %v182 = vld [vmem:[#allocation2 + $0x38] sm:$0xff]
    %v183 = vpack.c.bf16 %v175, %v175
    %v184 = vpack.c.bf16 %v176, %v176
    %v185 = vpack.c.bf16 %v177, %v177
    %v186 = vpack.c.bf16 %v178, %v178
    %v187 = vpack.c.bf16 %v179, %v179
    %v188 = vpack.c.bf16 %v180, %v180
    %v189 = vpack.c.bf16 %v181, %v181
    %v190 = vpack.c.bf16 %v182, %v182
    %191 = vst [vmem:[%s2] sm:$0xf] %v183
    %192 = vst [vmem:[%s2 + $0x4] sm:$0xf] %v184
    %193 = vst [vmem:[%s2 + $0x8] sm:$0xf] %v185
    %194 = vst [vmem:[%s2 + $0xc] sm:$0xf] %v186
    %195 = vst [vmem:[%s2 + $0x10] sm:$0xf] %v187
    %196 = vst [vmem:[%s2 + $0x14] sm:$0xf] %v188
    %197 = vst [vmem:[%s2 + $0x18] sm:$0xf] %v189
    %198 = vst [vmem:[%s2 + $0x1c] sm:$0xf] %v190
  $region17: #{forward.19} parent=0 // pred_fallthru
    _
  // Predicated region
  $region18: #{forward.19} parent=0 // pred_check
    _
  $region19: #{forward.19} parent=0 // pred_check_branch
    %200 = sbr.rel (0) target = $region21
  $region20: #{forward.19} parent=0 // pred_region
    _
  $region21: #{forward.19} parent=0 // pred_fallthru
    _
  // Predicated region
  $region22: #{forward.19} parent=0 // pred_check
    _
  $region23: #{forward.19} parent=0 // pred_check_branch
    %202 = sbr.rel (0) target = $region25
  $region24: #{forward.19} parent=0 // pred_region
    _
  $region25: #{forward.19} parent=0 // pred_fallthru
    _

// kernel: forward.20
$region0: #{forward.20}
  #allocation0 [shape = 'u32[]', space=smem, size = 0x4, offset = 0x4, fixed_abs, tag = 'smem constant byte address 0x4 - core index']
  #allocation1 [shape = 'u32[72,128]{1,0:T(1,128)}', space=vmem, size = 0x9000, scoped, tag = 'internal scratch']
  %s0 = inlined_call_operand.vmem [shape: bf16[128,128], index: 0, kind: input, shape index: {}]
  %s1 = inlined_call_operand.vmem [shape: f32[1,128], index: 1, kind: input, shape index: {}]
  %s2 = inlined_call_operand.vmem [shape: f32[1,128], index: 2, kind: input, shape index: {}]
  %s3 = inlined_call_operand.vmem [shape: bf16[128,128], index: 3, kind: output, shape index: {}]
  %s4 = sld [smem:[#allocation0]]
  $region22: #{forward.20} parent=0
    _
  %s6 = ssub.s32 1, %s4
  %s7 = scalar_select 0, %s6, %s4
  // Predicated region
  $region2: #{forward.20} parent=0 // pred_check
    _
  $region3: #{forward.20} parent=0 // pred_check_branch
    %9 = sbr.rel (0) target = $region5
  $region4: #{forward.20} parent=0 // pred_region
    _
  $region5: #{forward.20} parent=0 // pred_fallthru
    _
  // Predicated region
  $region6: #{forward.20} parent=0 // pred_check
    _
  $region7: #{forward.20} parent=0 // pred_check_branch
    %11 = sbr.rel (0) target = $region9
  $region8: #{forward.20} parent=0 // pred_region
    _
  $region9: #{forward.20} parent=0 // pred_fallthru
    _
  // Predicated region
  $region10: #{forward.20} parent=0 // pred_check
    _
  $region11: #{forward.20} parent=0 // pred_check_branch
    %13 = sbr.rel (0) target = $region13
  $region12: #{forward.20} parent=0 // pred_region
    _
  $region13: #{forward.20} parent=0 // pred_fallthru
    _
  %v14 = vld [vmem:[%s0] sm:$0xf]
  %v15 = vld [vmem:[%s0 + $0x4] sm:$0xf]
  %v16 = vld [vmem:[%s0 + $0x8] sm:$0xf]
  %v17 = vld [vmem:[%s0 + $0xc] sm:$0xf]
  %v18 = vld [vmem:[%s0 + $0x10] sm:$0xf]
  %v19 = vld [vmem:[%s0 + $0x14] sm:$0xf]
  %v20 = vld [vmem:[%s0 + $0x18] sm:$0xf]
  %v21 = vld [vmem:[%s0 + $0x1c] sm:$0xf]
  %v22 = vld [vmem:[%s0 + $0x20] sm:$0xf]
  %v23 = vld [vmem:[%s0 + $0x24] sm:$0xf]
  %v24 = vld [vmem:[%s0 + $0x28] sm:$0xf]
  %v25 = vld [vmem:[%s0 + $0x2c] sm:$0xf]
  %v26 = vld [vmem:[%s0 + $0x30] sm:$0xf]
  %v27 = vld [vmem:[%s0 + $0x34] sm:$0xf]
  %v28 = vld [vmem:[%s0 + $0x38] sm:$0xf]
  %v29 = vld [vmem:[%s0 + $0x3c] sm:$0xf]
  %v30 = vunpack.c.l.bf16 %v14
  %v31 = vunpack.c.l.bf16 %v15
  %v32 = vunpack.c.l.bf16 %v16
  %v33 = vunpack.c.l.bf16 %v17
  %v34 = vunpack.c.l.bf16 %v18
  %v35 = vunpack.c.l.bf16 %v19
  %v36 = vunpack.c.l.bf16 %v20
  %v37 = vunpack.c.l.bf16 %v21
  %v38 = vunpack.c.l.bf16 %v22
  %v39 = vunpack.c.l.bf16 %v23
  %v40 = vunpack.c.l.bf16 %v24
  %v41 = vunpack.c.l.bf16 %v25
  %v42 = vunpack.c.l.bf16 %v26
  %v43 = vunpack.c.l.bf16 %v27
  %v44 = vunpack.c.l.bf16 %v28
  %v45 = vunpack.c.l.bf16 %v29
  %v46 = vld [vmem:[%s1] sm:$0x1]
  %v48 = vperm.slane %v46, 0
  %v50 = vmul.f32 %v30, %v48
  %v51 = vmul.f32 %v31, %v48
  %v52 = vmul.f32 %v32, %v48
  %v53 = vmul.f32 %v33, %v48
  %v54 = vmul.f32 %v34, %v48
  %v55 = vmul.f32 %v35, %v48
  %v56 = vmul.f32 %v36, %v48
  %v57 = vmul.f32 %v37, %v48
  %v58 = vmul.f32 %v38, %v48
  %v59 = vmul.f32 %v39, %v48
  %v60 = vmul.f32 %v40, %v48
  %v61 = vmul.f32 %v41, %v48
  %v62 = vmul.f32 %v42, %v48
  %v63 = vmul.f32 %v43, %v48
  %v64 = vmul.f32 %v44, %v48
  %v65 = vmul.f32 %v45, %v48
  %v66 = vld [vmem:[%s2] sm:$0x1]
  %v68 = vperm.slane %v66, 0
  %v70 = vadd.f32 %v50, %v68
  %v71 = vadd.f32 %v51, %v68
  %v72 = vadd.f32 %v52, %v68
  %v73 = vadd.f32 %v53, %v68
  %v74 = vadd.f32 %v54, %v68
  %v75 = vadd.f32 %v55, %v68
  %v76 = vadd.f32 %v56, %v68
  %v77 = vadd.f32 %v57, %v68
  %v78 = vadd.f32 %v58, %v68
  %v79 = vadd.f32 %v59, %v68
  %v80 = vadd.f32 %v60, %v68
  %v81 = vadd.f32 %v61, %v68
  %v82 = vadd.f32 %v62, %v68
  %v83 = vadd.f32 %v63, %v68
  %v84 = vadd.f32 %v64, %v68
  %v85 = vadd.f32 %v65, %v68
  %v86 = vpack.c.bf16 %v70, %v70
  %v87 = vpack.c.bf16 %v71, %v71
  %v88 = vpack.c.bf16 %v72, %v72
  %v89 = vpack.c.bf16 %v73, %v73
  %v90 = vpack.c.bf16 %v74, %v74
  %v91 = vpack.c.bf16 %v75, %v75
  %v92 = vpack.c.bf16 %v76, %v76
  %v93 = vpack.c.bf16 %v77, %v77
  %v94 = vpack.c.bf16 %v78, %v78
  %v95 = vpack.c.bf16 %v79, %v79
  %v96 = vpack.c.bf16 %v80, %v80
  %v97 = vpack.c.bf16 %v81, %v81
  %v98 = vpack.c.bf16 %v82, %v82
  %v99 = vpack.c.bf16 %v83, %v83
  %v100 = vpack.c.bf16 %v84, %v84
  %v101 = vpack.c.bf16 %v85, %v85
  %102 = vst [vmem:[%s3] sm:$0xf] %v86
  %103 = vst [vmem:[%s3 + $0x4] sm:$0xf] %v87
  %104 = vst [vmem:[%s3 + $0x8] sm:$0xf] %v88
  %105 = vst [vmem:[%s3 + $0xc] sm:$0xf] %v89
  %106 = vst [vmem:[%s3 + $0x10] sm:$0xf] %v90
  %107 = vst [vmem:[%s3 + $0x14] sm:$0xf] %v91
  %108 = vst [vmem:[%s3 + $0x18] sm:$0xf] %v92
  %109 = vst [vmem:[%s3 + $0x1c] sm:$0xf] %v93
  %110 = vst [vmem:[%s3 + $0x20] sm:$0xf] %v94
  %111 = vst [vmem:[%s3 + $0x24] sm:$0xf] %v95
  %112 = vst [vmem:[%s3 + $0x28] sm:$0xf] %v96
  %113 = vst [vmem:[%s3 + $0x2c] sm:$0xf] %v97
  %114 = vst [vmem:[%s3 + $0x30] sm:$0xf] %v98
  %115 = vst [vmem:[%s3 + $0x34] sm:$0xf] %v99
  %116 = vst [vmem:[%s3 + $0x38] sm:$0xf] %v100
  %117 = vst [vmem:[%s3 + $0x3c] sm:$0xf] %v101
  // Predicated region
  $region14: #{forward.20} parent=0 // pred_check
    _
  $region15: #{forward.20} parent=0 // pred_check_branch
    %119 = sbr.rel (0) target = $region17
  $region16: #{forward.20} parent=0 // pred_region
    _
  $region17: #{forward.20} parent=0 // pred_fallthru
    _
  // Predicated region
  $region18: #{forward.20} parent=0 // pred_check
    _
  $region19: #{forward.20} parent=0 // pred_check_branch
    %121 = sbr.rel (0) target = $region21
  $region20: #{forward.20} parent=0 // pred_region
    _
  $region21: #{forward.20} parent=0 // pred_fallthru
    _

// kernel: forward.21
$region0: #{forward.21}
  #allocation0 [shape = 'u32[]', space=smem, size = 0x4, offset = 0x4, fixed_abs, tag = 'smem constant byte address 0x4 - core index']
  #allocation1 [shape = 'u32[72,128]{1,0:T(1,128)}', space=vmem, size = 0x9000, scoped, tag = 'internal scratch']
  #allocation2 [shape = 'f32[176,128]{1,0:T(8,128)}', space=vmem, size = 0x16000, scoped, tag = 'scratch operand']
  %s0 = inlined_call_operand.vmem [shape: bf16[176,128], index: 0, kind: input, shape index: {}]
  %s1 = inlined_call_operand.vmem [shape: bf16[128,128], index: 1, kind: input, shape index: {}]
  %s2 = inlined_call_operand.vmem [shape: bf16[176,128], index: 2, kind: output, shape index: {}]
  %s3 = sld [smem:[#allocation0]]
  $region26: #{forward.21} parent=0
    _
  %s5 = ssub.s32 1, %s3
  %s6 = scalar_select 0, %s5, %s3
  // Predicated region
  $region2: #{forward.21} parent=0 // pred_check
    _
  $region3: #{forward.21} parent=0 // pred_check_branch
    %8 = sbr.rel (0) target = $region5
  $region4: #{forward.21} parent=0 // pred_region
    _
  $region5: #{forward.21} parent=0 // pred_fallthru
    _
  // Predicated region
  $region6: #{forward.21} parent=0 // pred_check
    _
  $region7: #{forward.21} parent=0 // pred_check_branch
    %10 = sbr.rel (0) target = $region9
  $region8: #{forward.21} parent=0 // pred_region
    _
  $region9: #{forward.21} parent=0 // pred_fallthru
    _
  %p11 = scmp.eq.s32.totalorder 0, 0
  // Predicated region
  $region10: #{forward.21} parent=0 // pred_check
    %p12 = pneg %p11
  $region11: #{forward.21} parent=0 // pred_check_branch
    %14 = sbr.rel (%p12) target = $region13
  $region12: #{forward.21} parent=0 // pred_region
    %15 = vst [vmem:[#allocation2] sm:$0xff] 0.0
    %16 = vst [vmem:[#allocation2 + $0x8] sm:$0xff] 0.0
    %17 = vst [vmem:[#allocation2 + $0x10] sm:$0xff] 0.0
    %18 = vst [vmem:[#allocation2 + $0x18] sm:$0xff] 0.0
    %19 = vst [vmem:[#allocation2 + $0x20] sm:$0xff] 0.0
    %20 = vst [vmem:[#allocation2 + $0x28] sm:$0xff] 0.0
    %21 = vst [vmem:[#allocation2 + $0x30] sm:$0xff] 0.0
    %22 = vst [vmem:[#allocation2 + $0x38] sm:$0xff] 0.0
    %23 = vst [vmem:[#allocation2 + $0x40] sm:$0xff] 0.0
    %24 = vst [vmem:[#allocation2 + $0x48] sm:$0xff] 0.0
    %25 = vst [vmem:[#allocation2 + $0x50] sm:$0xff] 0.0
    %26 = vst [vmem:[#allocation2 + $0x58] sm:$0xff] 0.0
    %27 = vst [vmem:[#allocation2 + $0x60] sm:$0xff] 0.0
    %28 = vst [vmem:[#allocation2 + $0x68] sm:$0xff] 0.0
    %29 = vst [vmem:[#allocation2 + $0x70] sm:$0xff] 0.0
    %30 = vst [vmem:[#allocation2 + $0x78] sm:$0xff] 0.0
    %31 = vst [vmem:[#allocation2 + $0x80] sm:$0xff] 0.0
    %32 = vst [vmem:[#allocation2 + $0x88] sm:$0xff] 0.0
    %33 = vst [vmem:[#allocation2 + $0x90] sm:$0xff] 0.0
    %34 = vst [vmem:[#allocation2 + $0x98] sm:$0xff] 0.0
    %35 = vst [vmem:[#allocation2 + $0xa0] sm:$0xff] 0.0
    %36 = vst [vmem:[#allocation2 + $0xa8] sm:$0xff] 0.0
  $region13: #{forward.21} parent=0 // pred_fallthru
    _
  %v37 = vld [vmem:[#allocation2] sm:$0xff]
  %v38 = vld [vmem:[#allocation2 + $0x8] sm:$0xff]
  %v39 = vld [vmem:[#allocation2 + $0x10] sm:$0xff]
  %v40 = vld [vmem:[#allocation2 + $0x18] sm:$0xff]
  %v41 = vld [vmem:[#allocation2 + $0x20] sm:$0xff]
  %v42 = vld [vmem:[#allocation2 + $0x28] sm:$0xff]
  %v43 = vld [vmem:[#allocation2 + $0x30] sm:$0xff]
  %v44 = vld [vmem:[#allocation2 + $0x38] sm:$0xff]
  %v45 = vld [vmem:[#allocation2 + $0x40] sm:$0xff]
  %v46 = vld [vmem:[#allocation2 + $0x48] sm:$0xff]
  %v47 = vld [vmem:[#allocation2 + $0x50] sm:$0xff]
  %v48 = vld [vmem:[#allocation2 + $0x58] sm:$0xff]
  %v49 = vld [vmem:[#allocation2 + $0x60] sm:$0xff]
  %v50 = vld [vmem:[#allocation2 + $0x68] sm:$0xff]
  %v51 = vld [vmem:[#allocation2 + $0x70] sm:$0xff]
  %v52 = vld [vmem:[#allocation2 + $0x78] sm:$0xff]
  %v53 = vld [vmem:[#allocation2 + $0x80] sm:$0xff]
  %v54 = vld [vmem:[#allocation2 + $0x88] sm:$0xff]
  %v55 = vld [vmem:[#allocation2 + $0x90] sm:$0xff]
  %v56 = vld [vmem:[#allocation2 + $0x98] sm:$0xff]
  %v57 = vld [vmem:[#allocation2 + $0xa0] sm:$0xff]
  %v58 = vld [vmem:[#allocation2 + $0xa8] sm:$0xff]
  %v59 = vld [vmem:[%s0] sm:$0xf]
  %v60 = vld [vmem:[%s0 + $0x4] sm:$0xf]
  %v61 = vld [vmem:[%s0 + $0x8] sm:$0xf]
  %v62 = vld [vmem:[%s0 + $0xc] sm:$0xf]
  %v63 = vld [vmem:[%s0 + $0x10] sm:$0xf]
  %v64 = vld [vmem:[%s0 + $0x14] sm:$0xf]
  %v65 = vld [vmem:[%s0 + $0x18] sm:$0xf]
  %v66 = vld [vmem:[%s0 + $0x1c] sm:$0xf]
  %v67 = vld [vmem:[%s0 + $0x20] sm:$0xf]
  %v68 = vld [vmem:[%s0 + $0x24] sm:$0xf]
  %v69 = vld [vmem:[%s0 + $0x28] sm:$0xf]
  %v70 = vld [vmem:[%s0 + $0x2c] sm:$0xf]
  %v71 = vld [vmem:[%s0 + $0x30] sm:$0xf]
  %v72 = vld [vmem:[%s0 + $0x34] sm:$0xf]
  %v73 = vld [vmem:[%s0 + $0x38] sm:$0xf]
  %v74 = vld [vmem:[%s0 + $0x3c] sm:$0xf]
  %v75 = vld [vmem:[%s0 + $0x40] sm:$0xf]
  %v76 = vld [vmem:[%s0 + $0x44] sm:$0xf]
  %v77 = vld [vmem:[%s0 + $0x48] sm:$0xf]
  %v78 = vld [vmem:[%s0 + $0x4c] sm:$0xf]
  %v79 = vld [vmem:[%s0 + $0x50] sm:$0xf]
  %v80 = vld [vmem:[%s0 + $0x54] sm:$0xf]
  %v81 = vld [vmem:[%s1] sm:$0xf]
  %v82 = vld [vmem:[%s1 + $0x4] sm:$0xf]
  %v83 = vld [vmem:[%s1 + $0x8] sm:$0xf]
  %v84 = vld [vmem:[%s1 + $0xc] sm:$0xf]
  %v85 = vld [vmem:[%s1 + $0x10] sm:$0xf]
  %v86 = vld [vmem:[%s1 + $0x14] sm:$0xf]
  %v87 = vld [vmem:[%s1 + $0x18] sm:$0xf]
  %v88 = vld [vmem:[%s1 + $0x1c] sm:$0xf]
  %v89 = vld [vmem:[%s1 + $0x20] sm:$0xf]
  %v90 = vld [vmem:[%s1 + $0x24] sm:$0xf]
  %v91 = vld [vmem:[%s1 + $0x28] sm:$0xf]
  %v92 = vld [vmem:[%s1 + $0x2c] sm:$0xf]
  %v93 = vld [vmem:[%s1 + $0x30] sm:$0xf]
  %v94 = vld [vmem:[%s1 + $0x34] sm:$0xf]
  %v95 = vld [vmem:[%s1 + $0x38] sm:$0xf]
  %v96 = vld [vmem:[%s1 + $0x3c] sm:$0xf]
  %v119 = vunpack.c.l.b16 %v59
  %v120 = vunpack.c.l.b16 %v60
  %v121 = vunpack.c.l.b16 %v61
  %v122 = vunpack.c.l.b16 %v62
  %v123 = vunpack.c.l.b16 %v63
  %v124 = vunpack.c.l.b16 %v64
  %v125 = vunpack.c.l.b16 %v65
  %v126 = vunpack.c.l.b16 %v66
  %v127 = vunpack.c.l.b16 %v67
  %v128 = vunpack.c.l.b16 %v68
  %v129 = vunpack.c.l.b16 %v69
  %v130 = vunpack.c.l.b16 %v70
  %v131 = vunpack.c.l.b16 %v71
  %v132 = vunpack.c.l.b16 %v72
  %v133 = vunpack.c.l.b16 %v73
  %v134 = vunpack.c.l.b16 %v74
  %v135 = vunpack.c.l.b16 %v75
  %v136 = vunpack.c.l.b16 %v76
  %v137 = vunpack.c.l.b16 %v77
  %v138 = vunpack.c.l.b16 %v78
  %v139 = vunpack.c.l.b16 %v79
  %v140 = vunpack.c.l.b16 %v80
  %v141 = vpack.c.b16 %v120, %v119
  %v142 = vpack.c.b16 %v122, %v121
  %v143 = vpack.c.b16 %v124, %v123
  %v144 = vpack.c.b16 %v126, %v125
  %v145 = vpack.c.b16 %v128, %v127
  %v146 = vpack.c.b16 %v130, %v129
  %v147 = vpack.c.b16 %v132, %v131
  %v148 = vpack.c.b16 %v134, %v133
  %v149 = vpack.c.b16 %v136, %v135
  %v150 = vpack.c.b16 %v138, %v137
  %v151 = vpack.c.b16 %v140, %v139
  %v179 = vunpack.c.l.b16 %v81
  %v180 = vunpack.c.l.b16 %v82
  %v181 = vunpack.c.l.b16 %v83
  %v182 = vunpack.c.l.b16 %v84
  %v183 = vunpack.c.l.b16 %v85
  %v184 = vunpack.c.l.b16 %v86
  %v185 = vunpack.c.l.b16 %v87
  %v186 = vunpack.c.l.b16 %v88
  %v187 = vunpack.c.l.b16 %v89
  %v188 = vunpack.c.l.b16 %v90
  %v189 = vunpack.c.l.b16 %v91
  %v190 = vunpack.c.l.b16 %v92
  %v191 = vunpack.c.l.b16 %v93
  %v192 = vunpack.c.l.b16 %v94
  %v193 = vunpack.c.l.b16 %v95
  %v194 = vunpack.c.l.b16 %v96
  %v195 = vpack.c.b16 %v180, %v179
  %v196 = vpack.c.b16 %v182, %v181
  %v197 = vpack.c.b16 %v184, %v183
  %v198 = vpack.c.b16 %v186, %v185
  %v199 = vpack.c.b16 %v188, %v187
  %v200 = vpack.c.b16 %v190, %v189
  %v201 = vpack.c.b16 %v192, %v191
  %v202 = vpack.c.b16 %v194, %v193
  %211 = vmatpush.bf16.msra.mxu0 %v202
  %212 = vmatpush.bf16.msra.mxu0 %v201
  %213 = vmatpush.bf16.msra.mxu0 %v200
  %214 = vmatpush.bf16.msra.mxu0 %v199
  %215 = vmatpush.bf16.msra.mxu0 %v198
  %216 = vmatpush.bf16.msra.mxu0 %v197
  %217 = vmatpush.bf16.msra.mxu0 %v196
  %218 = vmatpush.bf16.msra.mxu0 %v195
  %219 = vmatmul.bf16.gmra.mxu0 %v141
  %v220 = vpop.f32.mrf.mxu0
  %v221 = vadd.f32 0.0, %v220
  %v222 = vpop.f32.mrf.mxu0
  %v223 = vadd.f32 0.0, %v222
  %224 = vmatmul.bf16.gmra.mxu0 %v142
  %v225 = vpop.f32.mrf.mxu0
  %v226 = vadd.f32 0.0, %v225
  %v227 = vpop.f32.mrf.mxu0
  %v228 = vadd.f32 0.0, %v227
  %229 = vmatmul.bf16.gmra.mxu0 %v143
  %v230 = vpop.f32.mrf.mxu0
  %v231 = vadd.f32 0.0, %v230
  %v232 = vpop.f32.mrf.mxu0
  %v233 = vadd.f32 0.0, %v232
  %234 = vmatmul.bf16.gmra.mxu0 %v144
  %v235 = vpop.f32.mrf.mxu0
  %v236 = vadd.f32 0.0, %v235
  %v237 = vpop.f32.mrf.mxu0
  %v238 = vadd.f32 0.0, %v237
  %239 = vmatmul.bf16.gmra.mxu0 %v145
  %v240 = vpop.f32.mrf.mxu0
  %v241 = vadd.f32 0.0, %v240
  %v242 = vpop.f32.mrf.mxu0
  %v243 = vadd.f32 0.0, %v242
  %244 = vmatmul.bf16.gmra.mxu0 %v146
  %v245 = vpop.f32.mrf.mxu0
  %v246 = vadd.f32 0.0, %v245
  %v247 = vpop.f32.mrf.mxu0
  %v248 = vadd.f32 0.0, %v247
  %249 = vmatmul.bf16.gmra.mxu0 %v147
  %v250 = vpop.f32.mrf.mxu0
  %v251 = vadd.f32 0.0, %v250
  %v252 = vpop.f32.mrf.mxu0
  %v253 = vadd.f32 0.0, %v252
  %254 = vmatmul.bf16.gmra.mxu0 %v148
  %v255 = vpop.f32.mrf.mxu0
  %v256 = vadd.f32 0.0, %v255
  %v257 = vpop.f32.mrf.mxu0
  %v258 = vadd.f32 0.0, %v257
  %259 = vmatmul.bf16.gmra.mxu0 %v149
  %v260 = vpop.f32.mrf.mxu0
  %v261 = vadd.f32 0.0, %v260
  %v262 = vpop.f32.mrf.mxu0
  %v263 = vadd.f32 0.0, %v262
  %264 = vmatmul.bf16.gmra.mxu0 %v150
  %v265 = vpop.f32.mrf.mxu0
  %v266 = vadd.f32 0.0, %v265
  %v267 = vpop.f32.mrf.mxu0
  %v268 = vadd.f32 0.0, %v267
  %269 = vmatmul.bf16.gmra.mxu0 %v151
  %v270 = vpop.f32.mrf.mxu0
  %v271 = vadd.f32 0.0, %v270
  %v272 = vpop.f32.mrf.mxu0
  %v273 = vadd.f32 0.0, %v272
  %274 = vdwg.mxu0
  %v275 = vadd.f32 %v37, %v221
  %v276 = vadd.f32 %v38, %v223
  %v277 = vadd.f32 %v39, %v226
  %v278 = vadd.f32 %v40, %v228
  %v279 = vadd.f32 %v41, %v231
  %v280 = vadd.f32 %v42, %v233
  %v281 = vadd.f32 %v43, %v236
  %v282 = vadd.f32 %v44, %v238
  %v283 = vadd.f32 %v45, %v241
  %v284 = vadd.f32 %v46, %v243
  %v285 = vadd.f32 %v47, %v246
  %v286 = vadd.f32 %v48, %v248
  %v287 = vadd.f32 %v49, %v251
  %v288 = vadd.f32 %v50, %v253
  %v289 = vadd.f32 %v51, %v256
  %v290 = vadd.f32 %v52, %v258
  %v291 = vadd.f32 %v53, %v261
  %v292 = vadd.f32 %v54, %v263
  %v293 = vadd.f32 %v55, %v266
  %v294 = vadd.f32 %v56, %v268
  %v295 = vadd.f32 %v57, %v271
  %v296 = vadd.f32 %v58, %v273
  %297 = vst [vmem:[#allocation2] sm:$0xff] %v275
  %298 = vst [vmem:[#allocation2 + $0x8] sm:$0xff] %v276
  %299 = vst [vmem:[#allocation2 + $0x10] sm:$0xff] %v277
  %300 = vst [vmem:[#allocation2 + $0x18] sm:$0xff] %v278
  %301 = vst [vmem:[#allocation2 + $0x20] sm:$0xff] %v279
  %302 = vst [vmem:[#allocation2 + $0x28] sm:$0xff] %v280
  %303 = vst [vmem:[#allocation2 + $0x30] sm:$0xff] %v281
  %304 = vst [vmem:[#allocation2 + $0x38] sm:$0xff] %v282
  %305 = vst [vmem:[#allocation2 + $0x40] sm:$0xff] %v283
  %306 = vst [vmem:[#allocation2 + $0x48] sm:$0xff] %v284
  %307 = vst [vmem:[#allocation2 + $0x50] sm:$0xff] %v285
  %308 = vst [vmem:[#allocation2 + $0x58] sm:$0xff] %v286
  %309 = vst [vmem:[#allocation2 + $0x60] sm:$0xff] %v287
  %310 = vst [vmem:[#allocation2 + $0x68] sm:$0xff] %v288
  %311 = vst [vmem:[#allocation2 + $0x70] sm:$0xff] %v289
  %312 = vst [vmem:[#allocation2 + $0x78] sm:$0xff] %v290
  %313 = vst [vmem:[#allocation2 + $0x80] sm:$0xff] %v291
  %314 = vst [vmem:[#allocation2 + $0x88] sm:$0xff] %v292
  %315 = vst [vmem:[#allocation2 + $0x90] sm:$0xff] %v293
  %316 = vst [vmem:[#allocation2 + $0x98] sm:$0xff] %v294
  %317 = vst [vmem:[#allocation2 + $0xa0] sm:$0xff] %v295
  %318 = vst [vmem:[#allocation2 + $0xa8] sm:$0xff] %v296
  // Predicated region
  $region14: #{forward.21} parent=0 // pred_check
    %p319 = pneg %p11
  $region15: #{forward.21} parent=0 // pred_check_branch
    %321 = sbr.rel (%p319) target = $region17
  $region16: #{forward.21} parent=0 // pred_region
    %v322 = vld [vmem:[#allocation2] sm:$0xff]
    %v323 = vld [vmem:[#allocation2 + $0x8] sm:$0xff]
    %v324 = vld [vmem:[#allocation2 + $0x10] sm:$0xff]
    %v325 = vld [vmem:[#allocation2 + $0x18] sm:$0xff]
    %v326 = vld [vmem:[#allocation2 + $0x20] sm:$0xff]
    %v327 = vld [vmem:[#allocation2 + $0x28] sm:$0xff]
    %v328 = vld [vmem:[#allocation2 + $0x30] sm:$0xff]
    %v329 = vld [vmem:[#allocation2 + $0x38] sm:$0xff]
    %v330 = vld [vmem:[#allocation2 + $0x40] sm:$0xff]
    %v331 = vld [vmem:[#allocation2 + $0x48] sm:$0xff]
    %v332 = vld [vmem:[#allocation2 + $0x50] sm:$0xff]
    %v333 = vld [vmem:[#allocation2 + $0x58] sm:$0xff]
    %v334 = vld [vmem:[#allocation2 + $0x60] sm:$0xff]
    %v335 = vld [vmem:[#allocation2 + $0x68] sm:$0xff]
    %v336 = vld [vmem:[#allocation2 + $0x70] sm:$0xff]
    %v337 = vld [vmem:[#allocation2 + $0x78] sm:$0xff]
    %v338 = vld [vmem:[#allocation2 + $0x80] sm:$0xff]
    %v339 = vld [vmem:[#allocation2 + $0x88] sm:$0xff]
    %v340 = vld [vmem:[#allocation2 + $0x90] sm:$0xff]
    %v341 = vld [vmem:[#allocation2 + $0x98] sm:$0xff]
    %v342 = vld [vmem:[#allocation2 + $0xa0] sm:$0xff]
    %v343 = vld [vmem:[#allocation2 + $0xa8] sm:$0xff]
    %v344 = vtanh.pop %v322
    %v345 = vtanh.pop %v323
    %v346 = vtanh.pop %v324
    %v347 = vtanh.pop %v325
    %v348 = vtanh.pop %v326
    %v349 = vtanh.pop %v327
    %v350 = vtanh.pop %v328
    %v351 = vtanh.pop %v329
    %v352 = vtanh.pop %v330
    %v353 = vtanh.pop %v331
    %v354 = vtanh.pop %v332
    %v355 = vtanh.pop %v333
    %v356 = vtanh.pop %v334
    %v357 = vtanh.pop %v335
    %v358 = vtanh.pop %v336
    %v359 = vtanh.pop %v337
    %v360 = vtanh.pop %v338
    %v361 = vtanh.pop %v339
    %v362 = vtanh.pop %v340
    %v363 = vtanh.pop %v341
    %v364 = vtanh.pop %v342
    %v365 = vtanh.pop %v343
    %v366 = vpack.c.bf16 %v344, %v344
    %v367 = vpack.c.bf16 %v345, %v345
    %v368 = vpack.c.bf16 %v346, %v346
    %v369 = vpack.c.bf16 %v347, %v347
    %v370 = vpack.c.bf16 %v348, %v348
    %v371 = vpack.c.bf16 %v349, %v349
    %v372 = vpack.c.bf16 %v350, %v350
    %v373 = vpack.c.bf16 %v351, %v351
    %v374 = vpack.c.bf16 %v352, %v352
    %v375 = vpack.c.bf16 %v353, %v353
    %v376 = vpack.c.bf16 %v354, %v354
    %v377 = vpack.c.bf16 %v355, %v355
    %v378 = vpack.c.bf16 %v356, %v356
    %v379 = vpack.c.bf16 %v357, %v357
    %v380 = vpack.c.bf16 %v358, %v358
    %v381 = vpack.c.bf16 %v359, %v359
    %v382 = vpack.c.bf16 %v360, %v360
    %v383 = vpack.c.bf16 %v361, %v361
    %v384 = vpack.c.bf16 %v362, %v362
    %v385 = vpack.c.bf16 %v363, %v363
    %v386 = vpack.c.bf16 %v364, %v364
    %v387 = vpack.c.bf16 %v365, %v365
    %388 = vst [vmem:[%s2] sm:$0xf] %v366
    %389 = vst [vmem:[%s2 + $0x4] sm:$0xf] %v367
    %390 = vst [vmem:[%s2 + $0x8] sm:$0xf] %v368
    %391 = vst [vmem:[%s2 + $0xc] sm:$0xf] %v369
    %392 = vst [vmem:[%s2 + $0x10] sm:$0xf] %v370
    %393 = vst [vmem:[%s2 + $0x14] sm:$0xf] %v371
    %394 = vst [vmem:[%s2 + $0x18] sm:$0xf] %v372
    %395 = vst [vmem:[%s2 + $0x1c] sm:$0xf] %v373
    %396 = vst [vmem:[%s2 + $0x20] sm:$0xf] %v374
    %397 = vst [vmem:[%s2 + $0x24] sm:$0xf] %v375
    %398 = vst [vmem:[%s2 + $0x28] sm:$0xf] %v376
    %399 = vst [vmem:[%s2 + $0x2c] sm:$0xf] %v377
    %400 = vst [vmem:[%s2 + $0x30] sm:$0xf] %v378
    %401 = vst [vmem:[%s2 + $0x34] sm:$0xf] %v379
    %402 = vst [vmem:[%s2 + $0x38] sm:$0xf] %v380
    %403 = vst [vmem:[%s2 + $0x3c] sm:$0xf] %v381
    %404 = vst [vmem:[%s2 + $0x40] sm:$0xf] %v382
    %405 = vst [vmem:[%s2 + $0x44] sm:$0xf] %v383
    %406 = vst [vmem:[%s2 + $0x48] sm:$0xf] %v384
    %407 = vst [vmem:[%s2 + $0x4c] sm:$0xf] %v385
    %408 = vst [vmem:[%s2 + $0x50] sm:$0xf] %v386
    %409 = vst [vmem:[%s2 + $0x54] sm:$0xf] %v387
  $region17: #{forward.21} parent=0 // pred_fallthru
    _
  // Predicated region
  $region18: #{forward.21} parent=0 // pred_check
    _
  $region19: #{forward.21} parent=0 // pred_check_branch
    %411 = sbr.rel (0) target = $region21
  $region20: #{forward.21} parent=0 // pred_region
    _
  $region21: #{forward.21} parent=0 // pred_fallthru
    _
  // Predicated region
  $region22: #{forward.21} parent=0 // pred_check
    _
  $region23: #{forward.21} parent=0 // pred_check_branch
    %413 = sbr.rel (0) target = $region25
  $region24: #{forward.21} parent=0 // pred_region
    _
  $region25: #{forward.21} parent=0 // pred_fallthru
    _

</llo_original>
